<compile_context>
chip_gen: v6e
topology: v6e:2x2x1
jax: 0.10.0
libtpu: 0.0.40
codegen_flags: <defaults>
</compile_context>

<pallas_src>
import functools

import jax
import jax.numpy as jnp
from jax import lax
from jax.experimental import pallas as pl
from jax.experimental.pallas import tpu as pltpu


# ---------------------------------------------------------------------------
# Kernel 1: K / V projection (1x1 convs as channel matmuls), once per tile.
# ---------------------------------------------------------------------------
def _kv_proj_kernel(x_ref, wk_ref, bk_ref, wv_ref, bv_ref, k_ref, v_ref):
    # x_ref: (1, C, TN) f32 tile of the input in channel-major layout.
    x_bf = x_ref[0].astype(jnp.bfloat16)                               # (C, TN)
    k = jnp.dot(wk_ref[...], x_bf,
                preferred_element_type=jnp.float32) + bk_ref[...]      # (Cq, TN)
    v = jnp.dot(wv_ref[...], x_bf,
                preferred_element_type=jnp.float32) + bv_ref[...]      # (C, TN)
    k_ref[0] = k.astype(k_ref.dtype)
    v_ref[0] = v.astype(v_ref.dtype)


# ---------------------------------------------------------------------------
# Kernel 2: attention over query tiles (Q projection, softmax, attn @ V,
# residual).  K/V are read back from HBM in bf16 (computed by kernel 1).
# ---------------------------------------------------------------------------
def _attn_kernel(x_ref, k_ref, v_ref, wq_ref, bq_ref, gamma_ref,
                 out_ref, *attn_refs, attn_is_bf16):
    x_q = x_ref[0]                                                     # (C, TQ) f32

    # Query projection for this tile only (each tile is visited exactly once).
    q = jnp.dot(wq_ref[...], x_q.astype(jnp.bfloat16),
                preferred_element_type=jnp.float32) + bq_ref[...]      # (Cq, TQ)

    k = k_ref[0]                                                       # (Cq, N) bf16
    v = v_ref[0]                                                       # (C,  N) bf16

    # energy[i, j] = <q[:, i], k[:, j]> -- contract the channel axis directly.
    energy = lax.dot_general(
        q.astype(jnp.bfloat16), k,
        dimension_numbers=(((0,), (0,)), ((), ())),
        preferred_element_type=jnp.float32)                            # (TQ, N)

    # Numerically stable softmax; normalisation via the EUP approx reciprocal.
    m = jnp.max(energy, axis=-1, keepdims=True)
    p = jnp.exp(energy - m)
    inv = pl.reciprocal(jnp.sum(p, axis=-1, keepdims=True), approx=True)
    attn = p * inv                                                     # (TQ, N) f32
    attn_bf = attn.astype(jnp.bfloat16)                                # cast once, reuse

    if attn_refs:
        a_ref = attn_refs[0]
        a_ref[0] = attn_bf if attn_is_bf16 else attn.astype(a_ref.dtype)

    # torch: out = bmm(proj_value, attention^T) -> out[c, i] = sum_j v[c,j]*attn[i,j]
    out_av = lax.dot_general(
        v, attn_bf,
        dimension_numbers=(((1,), (1,)), ((), ())),
        preferred_element_type=jnp.float32)                            # (C, TQ)

    out_ref[0] = (gamma_ref[0, 0] * out_av + x_q).astype(out_ref.dtype)


# ---------------------------------------------------------------------------
# Tile / VMEM sizing (generation-aware).
# ---------------------------------------------------------------------------
def _vmem_budget_bytes():
    """Scoped-VMEM budget: ~3/4 of physical VMEM, capped at 96 MiB.

    v7x: 64 MiB physical -> 48 MiB; v5e/v6e: 128 MiB physical -> 96 MiB.
    Falls back to the conservative v7x figure if the query is unavailable.
    """
    try:
        cap = int(pltpu.get_tpu_info().vmem_capacity_bytes)
    except Exception:
        cap = 64 * 1024 * 1024
    return min((cap * 3) // 4, 96 * 1024 * 1024)


def _attn_vmem_estimate(tq, n, c, cq, attn_bytes, with_attn):
    """Rough per-grid-step VMEM footprint of the attention kernel (bytes)."""
    kv = 2 * 2 * n * (c + cq)                     # bf16 K/V, double-buffered
    xio = 2 * 2 * c * tq * 4                      # f32 x-tile in + out-tile, double-buffered
    attn_out = 2 * tq * n * attn_bytes if with_attn else 0
    temps = tq * n * (4 + 4 + 2)                  # energy, p (f32) + bf16 attention
    weights = 2 * (cq * c * 2 + cq * 4)
    return kv + xio + attn_out + temps + weights


def _choose_tq(n, c, cq, attn_bytes, with_attn, budget):
    """Largest query tile (multiple of 128, dividing N) that fits the budget."""
    for cand in (1024, 512, 256, 128):
        if n % cand == 0 and _attn_vmem_estimate(
                cand, n, c, cq, attn_bytes, with_attn) <= (budget * 7) // 10:
            return cand
    # Fallback: a single full-extent tile.  Legal for awkward spatial sizes
    # (e.g. 7x7 -> N=49) but pads/masks heavily -- a perf cliff, not a bug.
    return n


# ---------------------------------------------------------------------------
# Wrapper
# ---------------------------------------------------------------------------
def self_attn_pallas(x_nchw, params, *, tq=None, attn_dtype=jnp.bfloat16,
                     return_attention=True):
    """x_nchw: (B, C, W, H) float32.  Returns (out_nchw, attention_or_None).

    attn_dtype=jnp.bfloat16 halves the dominant (B, N, N) HBM write stream;
    pass jnp.float32 for dtype parity with the PyTorch module.
    return_attention=False skips that write entirely (biggest possible win
    when the map is not consumed).
    """
    B, C, W, H = x_nchw.shape
    N = W * H
    Cq = params["wq"].shape[1]

    # NCHW -> (B, C, N) is a pure reshape (same flattening as torch .view);
    # no transposes anywhere in the wrapper.
    x_bcn = x_nchw.reshape(B, C, N).astype(jnp.float32)

    # Weights stored as (C_in, C_out); kernels contract on C with N in lanes,
    # so pass them transposed (tiny, done once).  bf16 for the MXU; biases f32.
    wk_t = params["wk"].T.astype(jnp.bfloat16)            # (Cq, C)
    wv_t = params["wv"].T.astype(jnp.bfloat16)            # (C, C)
    wq_t = params["wq"].T.astype(jnp.bfloat16)            # (Cq, C)
    bk = params["bk"].reshape(Cq, 1).astype(jnp.float32)
    bv = params["bv"].reshape(C, 1).astype(jnp.float32)
    bq = params["bq"].reshape(Cq, 1).astype(jnp.float32)
    gamma = params["gamma"].reshape(1, 1).astype(jnp.float32)

    budget = _vmem_budget_bytes()
    attn_bytes = 2 if attn_dtype == jnp.bfloat16 else 4
    if tq is None:
        tq = _choose_tq(N, C, Cq, attn_bytes, return_attention, budget)
    assert N % tq == 0, "query tile must divide N = W*H"
    assert tq % 128 == 0 or tq == N, "query tile must be a multiple of 128 or N"
    n_q = N // tq

    compiler_params = pltpu.CompilerParams(
        dimension_semantics=("parallel", "parallel"),
        vmem_limit_bytes=budget)

    # --- Kernel 1: K/V projection, hoisted out of the attention loop --------
    k_all, v_all = pl.pallas_call(
        _kv_proj_kernel,
        out_shape=(
            jax.ShapeDtypeStruct((B, Cq, N), jnp.bfloat16),
            jax.ShapeDtypeStruct((B, C, N), jnp.bfloat16),
        ),
        grid_spec=pltpu.PrefetchScalarGridSpec(
            num_scalar_prefetch=0,
            grid=(B, n_q),
            in_specs=[
                pl.BlockSpec((1, C, tq), lambda b, t: (b, 0, t)),   # x tile
                pl.BlockSpec((Cq, C), lambda b, t: (0, 0)),         # wk^T
                pl.BlockSpec((Cq, 1), lambda b, t: (0, 0)),         # bk
                pl.BlockSpec((C, C), lambda b, t: (0, 0)),          # wv^T
                pl.BlockSpec((C, 1), lambda b, t: (0, 0)),          # bv
            ],
            out_specs=[
                pl.BlockSpec((1, Cq, tq), lambda b, t: (b, 0, t)),  # K (bf16)
                pl.BlockSpec((1, C, tq), lambda b, t: (b, 0, t)),   # V (bf16)
            ],
        ),
        compiler_params=compiler_params,
    )(x_bcn, wk_t, bk, wv_t, bv)

    # --- Kernel 2: attention over query tiles -------------------------------
    out_struct = jax.ShapeDtypeStruct((B, C, N), jnp.float32)
    out_spec = pl.BlockSpec((1, C, tq), lambda b, qt: (b, 0, qt))
    if return_attention:
        out_shape = (out_struct, jax.ShapeDtypeStruct((B, N, N), attn_dtype))
        out_specs = [out_spec, pl.BlockSpec((1, tq, N), lambda b, qt: (b, qt, 0))]
    else:
        out_shape = out_struct
        out_specs = out_spec

    kernel = functools.partial(_attn_kernel,
                               attn_is_bf16=(attn_dtype == jnp.bfloat16))

    res = pl.pallas_call(
        kernel,
        out_shape=out_shape,
        grid_spec=pltpu.PrefetchScalarGridSpec(
            num_scalar_prefetch=0,
            grid=(B, n_q),
            in_specs=[
                pl.BlockSpec((1, C, tq), lambda b, qt: (b, 0, qt)),   # x tile (Q + residual)
                pl.BlockSpec((1, Cq, N), lambda b, qt: (b, 0, 0)),    # K (full, bf16)
                pl.BlockSpec((1, C, N), lambda b, qt: (b, 0, 0)),     # V (full, bf16)
                pl.BlockSpec((Cq, C), lambda b, qt: (0, 0)),          # wq^T
                pl.BlockSpec((Cq, 1), lambda b, qt: (0, 0)),          # bq
                pl.BlockSpec(memory_space=pltpu.MemorySpace.SMEM),    # gamma (scalar)
            ],
            out_specs=out_specs,
        ),
        compiler_params=compiler_params,
    )(x_bcn, k_all, v_all, wq_t, bq, gamma)

    if return_attention:
        out_bcn, attn = res
    else:
        out_bcn, attn = res, None

    out_nchw = out_bcn.reshape(B, C, W, H)   # pure reshape, no transpose
    return out_nchw, attn


# ---------------------------------------------------------------------------
# Pure-JAX f32 reference mirroring the PyTorch forward exactly.
# ---------------------------------------------------------------------------
def self_attn_reference(x_nchw, params):
    B, C, W, H = x_nchw.shape
    N = W * H
    x_bcn = x_nchw.reshape(B, C, N)
    q = jnp.einsum("oc,bcn->bon", params["wq"].T, x_bcn) + params["bq"].reshape(1, -1, 1)
    k = jnp.einsum("oc,bcn->bon", params["wk"].T, x_bcn) + params["bk"].reshape(1, -1, 1)
    v = jnp.einsum("oc,bcn->bon", params["wv"].T, x_bcn) + params["bv"].reshape(1, -1, 1)
    proj_query = jnp.transpose(q, (0, 2, 1))                        # (B, N, Cq)
    energy = jnp.einsum("bnc,bcm->bnm", proj_query, k)              # (B, N, N)
    attention = jax.nn.softmax(energy, axis=-1)
    out = jnp.einsum("bcn,bmn->bcm", v, attention)                  # (B, C, N)
    out = out.reshape(B, C, W, H)
    out = params["gamma"][0, 0] * out + x_nchw
    return out, attention


def init_params(key, in_dim):
    """Deterministic init matching nn.Conv2d(in_dim, *, kernel_size=1) shapes."""
    cq = in_dim // 8
    ks = jax.random.split(key, 6)
    scale = 0.1
    return {
        # stored as (C_in, C_out); the wrapper transposes for the kernels
        "wq": scale * jax.random.normal(ks[0], (in_dim, cq), jnp.float32),
        "bq": scale * jax.random.normal(ks[1], (1, cq), jnp.float32),
        "wk": scale * jax.random.normal(ks[2], (in_dim, cq), jnp.float32),
        "bk": scale * jax.random.normal(ks[3], (1, cq), jnp.float32),
        "wv": scale * jax.random.normal(ks[4], (in_dim, in_dim), jnp.float32),
        "bv": scale * jax.random.normal(ks[5], (1, in_dim), jnp.float32),
        # nn.Parameter(torch.zeros(1)) -> gamma initialized to 0
        "gamma": jnp.zeros((1, 1), jnp.float32),
    }


if __name__ == "__main__":
    key = jax.random.PRNGKey(0)
    k_x, k_p = jax.random.split(key)

    B, C, W, H = 2, 32, 16, 16   # in_dim=32 -> query/key channels = 4, N = 256
    x = jax.random.normal(k_x, (B, C, W, H), jnp.float32)
    params = init_params(k_p, C)
    # The module initialises gamma to 0 (pure residual).  Use a non-zero value
    # so the attention path actually contributes to `out`.
    params["gamma"] = jnp.full((1, 1), 0.5, jnp.float32)

    out_ref, attn_ref = self_attn_reference(x, params)

    # Full module semantics: (out, attention).  grid = (2, 2).
    run = jax.jit(functools.partial(self_attn_pallas, tq=128))
    out, attn = run(x, params)
    out = jax.block_until_ready(out)
    attn = jax.block_until_ready(attn)
    # bf16 MXU path + bf16 K/V storage + approx reciprocal -> loosened tol.
    assert jnp.allclose(out, out_ref, atol=2e-2, rtol=2e-2), "out mismatch"
    assert jnp.allclose(attn.astype(jnp.float32), attn_ref,
                        atol=2e-2, rtol=2e-2), "attention mismatch"

    # Variant that skips the (B, N, N) attention HBM write entirely.
    run_no_attn = jax.jit(functools.partial(self_attn_pallas, tq=128,
                                            return_attention=False))
    out2, attn2 = run_no_attn(x, params)
    out2 = jax.block_until_ready(out2)
    assert attn2 is None
    assert jnp.allclose(out2, out_ref, atol=2e-2, rtol=2e-2), "out (no-attn) mismatch"

    print("KERNEL_OK")
</pallas_src>

<mosaic_0001>
module attributes {stable_mosaic.version = 11 : i64} {
  func.func @_attn_kernel(%arg0: i32, %arg1: i32, %arg2: memref<1x32x128xf32, #tpu.memory_space<vmem>>, %arg3: memref<1x4x256xbf16, #tpu.memory_space<vmem>>, %arg4: memref<1x32x256xbf16, #tpu.memory_space<vmem>>, %arg5: memref<4x32xbf16, #tpu.memory_space<vmem>>, %arg6: memref<4x1xf32, #tpu.memory_space<vmem>>, %arg7: memref<1x1xf32, #tpu.memory_space<smem>>, %arg8: memref<1x32x128xf32, #tpu.memory_space<vmem>>, %arg9: memref<1x128x256xbf16, #tpu.memory_space<vmem>>) attributes {dimension_semantics = [#tpu.dimension_semantics<parallel>, #tpu.dimension_semantics<parallel>], iteration_bounds = array<i64: 2, 2>, scalar_prefetch = 0 : i64, scratch_operands = 0 : i64, tpu.core_type = #tpu.core_type<tc>, window_params = [{transform_indices = @transform_0, window_bounds = array<i64: 1, 32, 128>}, {transform_indices = @transform_1, window_bounds = array<i64: 1, 4, 256>}, {transform_indices = @transform_2, window_bounds = array<i64: 1, 32, 256>}, {pipeline_mode = #tpu.pipeline_mode<synchronous>, transform_indices = @transform_3, window_bounds = array<i64: 4, 32>}, {pipeline_mode = #tpu.pipeline_mode<synchronous>, transform_indices = @transform_4, window_bounds = array<i64: 4, 1>}, {transform_indices = @transform_5, window_bounds = array<i64: 1, 1>}, {transform_indices = @transform_6, window_bounds = array<i64: 1, 32, 128>}, {transform_indices = @transform_7, window_bounds = array<i64: 1, 128, 256>}]} {
    %c0 = arith.constant 0 : index
    %c0_0 = arith.constant 0 : index
    %c0_1 = arith.constant 0 : index
    %0 = vector.load %arg2[%c0, %c0_0, %c0_1] : memref<1x32x128xf32, #tpu.memory_space<vmem>>, vector<1x32x128xf32>
    %1 = vector.shape_cast %0 : vector<1x32x128xf32> to vector<32x128xf32>
    %c0_2 = arith.constant 0 : index
    %c0_3 = arith.constant 0 : index
    %2 = vector.load %arg5[%c0_2, %c0_3] : memref<4x32xbf16, #tpu.memory_space<vmem>>, vector<4x32xbf16>
    %3 = arith.truncf %1 : vector<32x128xf32> to vector<32x128xbf16>
    %cst = arith.constant dense<0.000000e+00> : vector<4x128xf32>
    %4 = tpu.matmul %2, %3, %cst {dimension_numbers = #tpu.dot_dimension_numbers<[1], [0], [0], [1], [0, 0, 1, 1], [], []>} : vector<4x32xbf16>, vector<32x128xbf16>, vector<4x128xf32> -> vector<4x128xf32>
    %c0_4 = arith.constant 0 : index
    %c0_5 = arith.constant 0 : index
    %5 = vector.load %arg6[%c0_4, %c0_5] : memref<4x1xf32, #tpu.memory_space<vmem>>, vector<4x1xf32>
    %6 = vector.broadcast %5 : vector<4x1xf32> to vector<4x128xf32>
    %7 = arith.addf %4, %6 : vector<4x128xf32>
    %c0_6 = arith.constant 0 : index
    %c0_7 = arith.constant 0 : index
    %c0_8 = arith.constant 0 : index
    %8 = vector.load %arg3[%c0_6, %c0_7, %c0_8] : memref<1x4x256xbf16, #tpu.memory_space<vmem>>, vector<1x4x256xbf16>
    %9 = vector.shape_cast %8 : vector<1x4x256xbf16> to vector<4x256xbf16>
    %c0_9 = arith.constant 0 : index
    %c0_10 = arith.constant 0 : index
    %c0_11 = arith.constant 0 : index
    %10 = vector.load %arg4[%c0_9, %c0_10, %c0_11] : memref<1x32x256xbf16, #tpu.memory_space<vmem>>, vector<1x32x256xbf16>
    %11 = vector.shape_cast %10 : vector<1x32x256xbf16> to vector<32x256xbf16>
    %12 = arith.truncf %7 : vector<4x128xf32> to vector<4x128xbf16>
    %cst_12 = arith.constant dense<0.000000e+00> : vector<128x256xf32>
    %13 = tpu.matmul %12, %9, %cst_12 {dimension_numbers = #tpu.dot_dimension_numbers<[0], [0], [1], [1], [0, 1, 1, 1], [], []>} : vector<4x128xbf16>, vector<4x256xbf16>, vector<128x256xf32> -> vector<128x256xf32>
    %cst_13 = arith.constant dense<0xFF800000> : vector<128xf32>
    %14 = vector.multi_reduction <maximumf>, %13, %cst_13 [1] : vector<128x256xf32> to vector<128xf32>
    %15 = vector.shape_cast %14 : vector<128xf32> to vector<128x1xf32>
    %16 = vector.broadcast %15 : vector<128x1xf32> to vector<128x256xf32>
    %17 = arith.subf %13, %16 : vector<128x256xf32>
    %18 = math.exp %17 : vector<128x256xf32>
    %cst_14 = arith.constant dense<0.000000e+00> : vector<128xf32>
    %19 = vector.multi_reduction <add>, %18, %cst_14 [1] : vector<128x256xf32> to vector<128xf32>
    %20 = vector.shape_cast %19 : vector<128xf32> to vector<128x1xf32>
    %21 = tpu.reciprocal %20 {approx = true} : vector<128x1xf32> -> vector<128x1xf32>
    %22 = vector.broadcast %21 : vector<128x1xf32> to vector<128x256xf32>
    %23 = arith.mulf %18, %22 : vector<128x256xf32>
    %24 = arith.truncf %23 : vector<128x256xf32> to vector<128x256xbf16>
    %c0_15 = arith.constant 0 : index
    %c0_16 = arith.constant 0 : index
    %c0_17 = arith.constant 0 : index
    %25 = vector.load %arg9[%c0_15, %c0_16, %c0_17] : memref<1x128x256xbf16, #tpu.memory_space<vmem>>, vector<1x128x256xbf16>
    %26 = vector.shape_cast %25 : vector<1x128x256xbf16> to vector<128x256xbf16>
    %27 = vector.shape_cast %24 : vector<128x256xbf16> to vector<1x128x256xbf16>
    tpu.vector_store %arg9[%c0_15, %c0_16, %c0_17], %27 {strides = array<i32>} : memref<1x128x256xbf16, #tpu.memory_space<vmem>>, vector<1x128x256xbf16>,
    %cst_18 = arith.constant dense<0.000000e+00> : vector<32x128xf32>
    %28 = tpu.matmul %11, %24, %cst_18 {dimension_numbers = #tpu.dot_dimension_numbers<[1], [1], [0], [0], [0, 0, 1, 0], [], []>} : vector<32x256xbf16>, vector<128x256xbf16>, vector<32x128xf32> -> vector<32x128xf32>
    %c0_19 = arith.constant 0 : index
    %c0_20 = arith.constant 0 : index
    %29 = memref.load %arg7[%c0_19, %c0_20] : memref<1x1xf32, #tpu.memory_space<smem>>
    %30 = vector.broadcast %29 : f32 to vector<32x128xf32>
    %31 = arith.mulf %30, %28 : vector<32x128xf32>
    %32 = arith.addf %31, %1 : vector<32x128xf32>
    %c0_21 = arith.constant 0 : index
    %c0_22 = arith.constant 0 : index
    %c0_23 = arith.constant 0 : index
    %33 = vector.load %arg8[%c0_21, %c0_22, %c0_23] : memref<1x32x128xf32, #tpu.memory_space<vmem>>, vector<1x32x128xf32>
    %34 = vector.shape_cast %33 : vector<1x32x128xf32> to vector<32x128xf32>
    %35 = vector.shape_cast %32 : vector<32x128xf32> to vector<1x32x128xf32>
    tpu.vector_store %arg8[%c0_21, %c0_22, %c0_23], %35 {strides = array<i32>} : memref<1x32x128xf32, #tpu.memory_space<vmem>>, vector<1x32x128xf32>,
    return
  }
  func.func @transform_0(%arg0: i32, %arg1: i32) -> (i32, i32, i32) {
    %c0_i32 = arith.constant 0 : i32
    %c0_i32_0 = arith.constant 0 : i32
    return %arg0, %c0_i32, %arg1 : i32, i32, i32
  }
  func.func @transform_1(%arg0: i32, %arg1: i32) -> (i32, i32, i32) {
    %c0_i32 = arith.constant 0 : i32
    %c0_i32_0 = arith.constant 0 : i32
    %c0_i32_1 = arith.constant 0 : i32
    return %arg0, %c0_i32, %c0_i32_0 : i32, i32, i32
  }
  func.func @transform_2(%arg0: i32, %arg1: i32) -> (i32, i32, i32) {
    %c0_i32 = arith.constant 0 : i32
    %c0_i32_0 = arith.constant 0 : i32
    %c0_i32_1 = arith.constant 0 : i32
    return %arg0, %c0_i32, %c0_i32_0 : i32, i32, i32
  }
  func.func @transform_3(%arg0: i32, %arg1: i32) -> (i32, i32) {
    %c0_i32 = arith.constant 0 : i32
    %c0_i32_0 = arith.constant 0 : i32
    %c0_i32_1 = arith.constant 0 : i32
    return %c0_i32, %c0_i32_0 : i32, i32
  }
  func.func @transform_4(%arg0: i32, %arg1: i32) -> (i32, i32) {
    %c0_i32 = arith.constant 0 : i32
    %c0_i32_0 = arith.constant 0 : i32
    %c0_i32_1 = arith.constant 0 : i32
    return %c0_i32, %c0_i32_0 : i32, i32
  }
  func.func @transform_5(%arg0: i32, %arg1: i32) -> (i32, i32) {
    %c0_i32 = arith.constant 0 : i32
    %c0_i32_0 = arith.constant 0 : i32
    %c0_i32_1 = arith.constant 0 : i32
    return %c0_i32, %c0_i32_0 : i32, i32
  }
  func.func @transform_6(%arg0: i32, %arg1: i32) -> (i32, i32, i32) {
    %c0_i32 = arith.constant 0 : i32
    %c0_i32_0 = arith.constant 0 : i32
    return %arg0, %c0_i32, %arg1 : i32, i32, i32
  }
  func.func @transform_7(%arg0: i32, %arg1: i32) -> (i32, i32, i32) {
    %c0_i32 = arith.constant 0 : i32
    %c0_i32_0 = arith.constant 0 : i32
    return %arg0, %arg1, %c0_i32 : i32, i32, i32
  }
}

module attributes {stable_mosaic.version = 11 : i64} {
  func.func @_kv_proj_kernel(%arg0: i32, %arg1: i32, %arg2: memref<1x32x128xf32, #tpu.memory_space<vmem>>, %arg3: memref<4x32xbf16, #tpu.memory_space<vmem>>, %arg4: memref<4x1xf32, #tpu.memory_space<vmem>>, %arg5: memref<32x32xbf16, #tpu.memory_space<vmem>>, %arg6: memref<32x1xf32, #tpu.memory_space<vmem>>, %arg7: memref<1x4x128xbf16, #tpu.memory_space<vmem>>, %arg8: memref<1x32x128xbf16, #tpu.memory_space<vmem>>) attributes {dimension_semantics = [#tpu.dimension_semantics<parallel>, #tpu.dimension_semantics<parallel>], iteration_bounds = array<i64: 2, 2>, scalar_prefetch = 0 : i64, scratch_operands = 0 : i64, tpu.core_type = #tpu.core_type<tc>, window_params = [{transform_indices = @transform_0, window_bounds = array<i64: 1, 32, 128>}, {pipeline_mode = #tpu.pipeline_mode<synchronous>, transform_indices = @transform_1, window_bounds = array<i64: 4, 32>}, {pipeline_mode = #tpu.pipeline_mode<synchronous>, transform_indices = @transform_2, window_bounds = array<i64: 4, 1>}, {pipeline_mode = #tpu.pipeline_mode<synchronous>, transform_indices = @transform_3, window_bounds = array<i64: 32, 32>}, {pipeline_mode = #tpu.pipeline_mode<synchronous>, transform_indices = @transform_4, window_bounds = array<i64: 32, 1>}, {transform_indices = @transform_5, window_bounds = array<i64: 1, 4, 128>}, {transform_indices = @transform_6, window_bounds = array<i64: 1, 32, 128>}]} {
    %c0 = arith.constant 0 : index
    %c0_0 = arith.constant 0 : index
    %c0_1 = arith.constant 0 : index
    %0 = vector.load %arg2[%c0, %c0_0, %c0_1] : memref<1x32x128xf32, #tpu.memory_space<vmem>>, vector<1x32x128xf32>
    %1 = vector.shape_cast %0 : vector<1x32x128xf32> to vector<32x128xf32>
    %2 = arith.truncf %1 : vector<32x128xf32> to vector<32x128xbf16>
    %c0_2 = arith.constant 0 : index
    %c0_3 = arith.constant 0 : index
    %3 = vector.load %arg3[%c0_2, %c0_3] : memref<4x32xbf16, #tpu.memory_space<vmem>>, vector<4x32xbf16>
    %cst = arith.constant dense<0.000000e+00> : vector<4x128xf32>
    %4 = tpu.matmul %3, %2, %cst {dimension_numbers = #tpu.dot_dimension_numbers<[1], [0], [0], [1], [0, 0, 1, 1], [], []>} : vector<4x32xbf16>, vector<32x128xbf16>, vector<4x128xf32> -> vector<4x128xf32>
    %c0_4 = arith.constant 0 : index
    %c0_5 = arith.constant 0 : index
    %5 = vector.load %arg4[%c0_4, %c0_5] : memref<4x1xf32, #tpu.memory_space<vmem>>, vector<4x1xf32>
    %6 = vector.broadcast %5 : vector<4x1xf32> to vector<4x128xf32>
    %7 = arith.addf %4, %6 : vector<4x128xf32>
    %c0_6 = arith.constant 0 : index
    %c0_7 = arith.constant 0 : index
    %8 = vector.load %arg5[%c0_6, %c0_7] : memref<32x32xbf16, #tpu.memory_space<vmem>>, vector<32x32xbf16>
    %cst_8 = arith.constant dense<0.000000e+00> : vector<32x128xf32>
    %9 = tpu.matmul %8, %2, %cst_8 {dimension_numbers = #tpu.dot_dimension_numbers<[1], [0], [0], [1], [0, 0, 1, 1], [], []>} : vector<32x32xbf16>, vector<32x128xbf16>, vector<32x128xf32> -> vector<32x128xf32>
    %c0_9 = arith.constant 0 : index
    %c0_10 = arith.constant 0 : index
    %10 = vector.load %arg6[%c0_9, %c0_10] : memref<32x1xf32, #tpu.memory_space<vmem>>, vector<32x1xf32>
    %11 = vector.broadcast %10 : vector<32x1xf32> to vector<32x128xf32>
    %12 = arith.addf %9, %11 : vector<32x128xf32>
    %13 = arith.truncf %7 : vector<4x128xf32> to vector<4x128xbf16>
    %c0_11 = arith.constant 0 : index
    %c0_12 = arith.constant 0 : index
    %c0_13 = arith.constant 0 : index
    %14 = vector.load %arg7[%c0_11, %c0_12, %c0_13] : memref<1x4x128xbf16, #tpu.memory_space<vmem>>, vector<1x4x128xbf16>
    %15 = vector.shape_cast %14 : vector<1x4x128xbf16> to vector<4x128xbf16>
    %16 = vector.shape_cast %13 : vector<4x128xbf16> to vector<1x4x128xbf16>
    tpu.vector_store %arg7[%c0_11, %c0_12, %c0_13], %16 {strides = array<i32>} : memref<1x4x128xbf16, #tpu.memory_space<vmem>>, vector<1x4x128xbf16>,
    %17 = arith.truncf %12 : vector<32x128xf32> to vector<32x128xbf16>
    %c0_14 = arith.constant 0 : index
    %c0_15 = arith.constant 0 : index
    %c0_16 = arith.constant 0 : index
    %18 = vector.load %arg8[%c0_14, %c0_15, %c0_16] : memref<1x32x128xbf16, #tpu.memory_space<vmem>>, vector<1x32x128xbf16>
    %19 = vector.shape_cast %18 : vector<1x32x128xbf16> to vector<32x128xbf16>
    %20 = vector.shape_cast %17 : vector<32x128xbf16> to vector<1x32x128xbf16>
    tpu.vector_store %arg8[%c0_14, %c0_15, %c0_16], %20 {strides = array<i32>} : memref<1x32x128xbf16, #tpu.memory_space<vmem>>, vector<1x32x128xbf16>,
    return
  }
  func.func @transform_0(%arg0: i32, %arg1: i32) -> (i32, i32, i32) {
    %c0_i32 = arith.constant 0 : i32
    %c0_i32_0 = arith.constant 0 : i32
    return %arg0, %c0_i32, %arg1 : i32, i32, i32
  }
  func.func @transform_1(%arg0: i32, %arg1: i32) -> (i32, i32) {
    %c0_i32 = arith.constant 0 : i32
    %c0_i32_0 = arith.constant 0 : i32
    %c0_i32_1 = arith.constant 0 : i32
    return %c0_i32, %c0_i32_0 : i32, i32
  }
  func.func @transform_2(%arg0: i32, %arg1: i32) -> (i32, i32) {
    %c0_i32 = arith.constant 0 : i32
    %c0_i32_0 = arith.constant 0 : i32
    %c0_i32_1 = arith.constant 0 : i32
    return %c0_i32, %c0_i32_0 : i32, i32
  }
  func.func @transform_3(%arg0: i32, %arg1: i32) -> (i32, i32) {
    %c0_i32 = arith.constant 0 : i32
    %c0_i32_0 = arith.constant 0 : i32
    %c0_i32_1 = arith.constant 0 : i32
    return %c0_i32, %c0_i32_0 : i32, i32
  }
  func.func @transform_4(%arg0: i32, %arg1: i32) -> (i32, i32) {
    %c0_i32 = arith.constant 0 : i32
    %c0_i32_0 = arith.constant 0 : i32
    %c0_i32_1 = arith.constant 0 : i32
    return %c0_i32, %c0_i32_0 : i32, i32
  }
  func.func @transform_5(%arg0: i32, %arg1: i32) -> (i32, i32, i32) {
    %c0_i32 = arith.constant 0 : i32
    %c0_i32_0 = arith.constant 0 : i32
    return %arg0, %c0_i32, %arg1 : i32, i32, i32
  }
  func.func @transform_6(%arg0: i32, %arg1: i32) -> (i32, i32, i32) {
    %c0_i32 = arith.constant 0 : i32
    %c0_i32_0 = arith.constant 0 : i32
    return %arg0, %c0_i32, %arg1 : i32, i32, i32
  }
}

</mosaic_0001>

<llo_original>
// kernel: self_attn_pallas.2
$region0: #{self_attn_pallas.2}
  #allocation0 [shape = 'u32[]', space=smem, size = 0x4, offset = 0x4, fixed_abs, tag = 'smem constant byte address 0x4 - core index']
  #allocation1 [shape = 'u32[144,128]{1,0:T(1,128)}', space=vmem, size = 0x12000, scoped, tag = 'internal scratch']
  %s0 = inlined_call_operand.vmem [shape: f32[2,32,256], index: 0, kind: input, shape index: {}]
  %s1 = inlined_call_operand.vmem [shape: bf16[4,32], index: 1, kind: input, shape index: {}]
  %s2 = inlined_call_operand.vmem [shape: f32[4,1], index: 2, kind: input, shape index: {}]
  %s3 = inlined_call_operand.vmem [shape: bf16[32,32], index: 3, kind: input, shape index: {}]
  %s4 = inlined_call_operand.vmem [shape: f32[32,1], index: 4, kind: input, shape index: {}]
  %s5 = inlined_call_operand.vmem [shape: bf16[2,4,256], index: 5, kind: output, shape index: {0}]
  %s6 = inlined_call_operand.vmem [shape: bf16[2,32,256], index: 6, kind: output, shape index: {1}]
  %7 = xla_tuple %s5, %s6
  %s8 = sld [smem:[#allocation0]]
  $region136: #{self_attn_pallas.2} parent=0
    _
  %s10 = ssub.s32 1, %s8
  %s11 = scalar_select 0, %s10, %s8
  $region1: #{self_attn_pallas.2} parent=0
    #allocation2 [shape = 'u8[32768]{0}', space=vmem, size = 0x8000, scoped, tag = 'input window, operand 0']
    #allocation3 [shape = 'u8[16384]{0}', space=vmem, size = 0x4000, scoped, tag = 'output window, operand 1']
    loop: start=0, step=1, limit=6
    $region2: #{self_attn_pallas.2} parent=1 // loop_pre_header
      _
    $region3: #{self_attn_pallas.2} parent=1 // loop_header
      %s13 = sphi 0, %s17
      %p14 = scmp.ge.s32.totalorder %s13, 6
      %s20 = sphi 0, %s32
      %s21 = sphi 0, %s28
      %s22 = sphi 0, %s20
      %s23 = sphi 0, %s21
      %s24 = sphi 0, %s22
      %s25 = sphi 0, %s23
      %s37 = sphi 0, %s39
      %s40 = sphi 0, %s37
      %s41 = sphi 0, %s40
      %s57 = sphi 0, %s41
      %s61 = sphi 0, %s61
      %s63 = sphi 0, %s61
      %s64 = sphi 0, %s63
      %s78 = sphi 0, %s64
      %s82 = sphi 0, %s82
      %s84 = sphi 0, %s82
      %s85 = sphi 0, %s84
      %s99 = sphi 0, %s85
      %s103 = sphi 0, %s103
      %s105 = sphi 0, %s103
      %s106 = sphi 0, %s105
      %s120 = sphi 0, %s106
      %s124 = sphi 0, %s124
      %s126 = sphi 0, %s124
      %s127 = sphi 0, %s126
      %s141 = sphi 0, %s127
      %s149 = sphi 0, %s151
      %s152 = sphi 0, %s149
      %s153 = sphi 0, %s152
      %s169 = sphi 0, %s153
      %s177 = sphi 0, %s179
      %s180 = sphi 0, %s177
      %s181 = sphi 0, %s180
      %s197 = sphi 0, %s181
    $region4: #{self_attn_pallas.2} parent=1 // loop_header_branch
      %16 = sbr.rel (%p14) target = $region8
    $region5: #{self_attn_pallas.2} parent=1 // loop_body
      %s18 = ssub.s32 %s13, 1
      %s19 = ssub.s32 %s13, 2
      %s26 = sadd.s32 1, %s21
      %p27 = scmp.ge.s32.totalorder %s26, 2
      %s28 = scalar_select %p27, 0, %s26
      %s29 = sadd.s32 1, %s20
      %s30 = scalar_select %p27, %s29, %s20
      %p31 = scmp.ge.s32.totalorder %s30, 2
      %s32 = scalar_select %p31, 0, %s30
      %s33 = ssub.s32 %s20, %s32
      %s34 = ssub.s32 %s21, %s28
      %s35 = sor.u32 %s33, %s34
      %p36 = scmp.eq.s32.totalorder %s35, 0
      %s38 = sadd.s32 %s37, 1
      %s39 = scalar_select %p36, %s37, %s38
      %p42 = pneg %p36
      %p43 = scmp.eq.s32.totalorder %s13, 3
      %p44 = por %p42, %p43
      %p45 = scmp.ne.s32.totalorder %s37, %s40
      %p46 = scmp.eq.s32.totalorder %s13, 0
      %p47 = por %p45, %p46
      %p48 = scmp.ne.s32.totalorder %s37, %s40
      %p49 = scmp.eq.s32.totalorder %s18, 3
      %p50 = por %p48, %p49
      %p51 = scmp.ne.s32.totalorder %s40, %s41
      %p52 = scmp.eq.s32.totalorder %s18, 0
      %p53 = por %p51, %p52
      %p54 = scmp.ne.s32.totalorder %s40, %s41
      %p55 = scmp.eq.s32.totalorder %s19, 3
      %p56 = por %p54, %p55
      %p58 = scmp.ne.s32.totalorder %s41, %s57
      %p59 = scmp.eq.s32.totalorder %s19, 0
      %p60 = por %p58, %p59
      %s62 = sadd.s32 %s61, 1
      %p65 = scmp.eq.s32.totalorder %s13, 3
      %p66 = scmp.ne.s32.totalorder %s61, %s63
      %p67 = scmp.eq.s32.totalorder %s13, 0
      %p68 = por %p66, %p67
      %p69 = scmp.ne.s32.totalorder %s61, %s63
      %p70 = scmp.eq.s32.totalorder %s18, 3
      %p71 = por %p69, %p70
      %p72 = scmp.ne.s32.totalorder %s63, %s64
      %p73 = scmp.eq.s32.totalorder %s18, 0
      %p74 = por %p72, %p73
      %p75 = scmp.ne.s32.totalorder %s63, %s64
      %p76 = scmp.eq.s32.totalorder %s19, 3
      %p77 = por %p75, %p76
      %p79 = scmp.ne.s32.totalorder %s64, %s78
      %p80 = scmp.eq.s32.totalorder %s19, 0
      %p81 = por %p79, %p80
      %s83 = sadd.s32 %s82, 1
      %p86 = scmp.eq.s32.totalorder %s13, 3
      %p87 = scmp.ne.s32.totalorder %s82, %s84
      %p88 = scmp.eq.s32.totalorder %s13, 0
      %p89 = por %p87, %p88
      %p90 = scmp.ne.s32.totalorder %s82, %s84
      %p91 = scmp.eq.s32.totalorder %s18, 3
      %p92 = por %p90, %p91
      %p93 = scmp.ne.s32.totalorder %s84, %s85
      %p94 = scmp.eq.s32.totalorder %s18, 0
      %p95 = por %p93, %p94
      %p96 = scmp.ne.s32.totalorder %s84, %s85
      %p97 = scmp.eq.s32.totalorder %s19, 3
      %p98 = por %p96, %p97
      %p100 = scmp.ne.s32.totalorder %s85, %s99
      %p101 = scmp.eq.s32.totalorder %s19, 0
      %p102 = por %p100, %p101
      %s104 = sadd.s32 %s103, 1
      %p107 = scmp.eq.s32.totalorder %s13, 3
      %p108 = scmp.ne.s32.totalorder %s103, %s105
      %p109 = scmp.eq.s32.totalorder %s13, 0
      %p110 = por %p108, %p109
      %p111 = scmp.ne.s32.totalorder %s103, %s105
      %p112 = scmp.eq.s32.totalorder %s18, 3
      %p113 = por %p111, %p112
      %p114 = scmp.ne.s32.totalorder %s105, %s106
      %p115 = scmp.eq.s32.totalorder %s18, 0
      %p116 = por %p114, %p115
      %p117 = scmp.ne.s32.totalorder %s105, %s106
      %p118 = scmp.eq.s32.totalorder %s19, 3
      %p119 = por %p117, %p118
      %p121 = scmp.ne.s32.totalorder %s106, %s120
      %p122 = scmp.eq.s32.totalorder %s19, 0
      %p123 = por %p121, %p122
      %s125 = sadd.s32 %s124, 1
      %p128 = scmp.eq.s32.totalorder %s13, 3
      %p129 = scmp.ne.s32.totalorder %s124, %s126
      %p130 = scmp.eq.s32.totalorder %s13, 0
      %p131 = por %p129, %p130
      %p132 = scmp.ne.s32.totalorder %s124, %s126
      %p133 = scmp.eq.s32.totalorder %s18, 3
      %p134 = por %p132, %p133
      %p135 = scmp.ne.s32.totalorder %s126, %s127
      %p136 = scmp.eq.s32.totalorder %s18, 0
      %p137 = por %p135, %p136
      %p138 = scmp.ne.s32.totalorder %s126, %s127
      %p139 = scmp.eq.s32.totalorder %s19, 3
      %p140 = por %p138, %p139
      %p142 = scmp.ne.s32.totalorder %s127, %s141
      %p143 = scmp.eq.s32.totalorder %s19, 0
      %p144 = por %p142, %p143
      %s145 = ssub.s32 %s20, %s32
      %s146 = ssub.s32 %s21, %s28
      %s147 = sor.u32 %s145, %s146
      %p148 = scmp.eq.s32.totalorder %s147, 0
      %s150 = sadd.s32 %s149, 1
      %s151 = scalar_select %p148, %s149, %s150
      %p154 = pneg %p148
      %p155 = scmp.eq.s32.totalorder %s13, 3
      %p156 = por %p154, %p155
      %p157 = scmp.ne.s32.totalorder %s149, %s152
      %p158 = scmp.eq.s32.totalorder %s13, 0
      %p159 = por %p157, %p158
      %p160 = scmp.ne.s32.totalorder %s149, %s152
      %p161 = scmp.eq.s32.totalorder %s18, 3
      %p162 = por %p160, %p161
      %p163 = scmp.ne.s32.totalorder %s152, %s153
      %p164 = scmp.eq.s32.totalorder %s18, 0
      %p165 = por %p163, %p164
      %p166 = scmp.ne.s32.totalorder %s152, %s153
      %p167 = scmp.eq.s32.totalorder %s19, 3
      %p168 = por %p166, %p167
      %p170 = scmp.ne.s32.totalorder %s153, %s169
      %p171 = scmp.eq.s32.totalorder %s19, 0
      %p172 = por %p170, %p171
      %s173 = ssub.s32 %s20, %s32
      %s174 = ssub.s32 %s21, %s28
      %s175 = sor.u32 %s173, %s174
      %p176 = scmp.eq.s32.totalorder %s175, 0
      %s178 = sadd.s32 %s177, 1
      %s179 = scalar_select %p176, %s177, %s178
      %p182 = pneg %p176
      %p183 = scmp.eq.s32.totalorder %s13, 3
      %p184 = por %p182, %p183
      %p185 = scmp.ne.s32.totalorder %s177, %s180
      %p186 = scmp.eq.s32.totalorder %s13, 0
      %p187 = por %p185, %p186
      %p188 = scmp.ne.s32.totalorder %s177, %s180
      %p189 = scmp.eq.s32.totalorder %s18, 3
      %p190 = por %p188, %p189
      %p191 = scmp.ne.s32.totalorder %s180, %s181
      %p192 = scmp.eq.s32.totalorder %s18, 0
      %p193 = por %p191, %p192
      %p194 = scmp.ne.s32.totalorder %s180, %s181
      %p195 = scmp.eq.s32.totalorder %s19, 3
      %p196 = por %p194, %p195
      %p198 = scmp.ne.s32.totalorder %s181, %s197
      %p199 = scmp.eq.s32.totalorder %s19, 0
      %p200 = por %p198, %p199
      %p201 = scmp.le.s32.totalorder 1, %s13
      %p202 = scmp.lt.s32.totalorder %s13, 5
      %p203 = pnand %p201, %p202
      %p204 = pneg %p203
      // Predicated region
      $region9: #{self_attn_pallas.2} parent=5 // pred_check
        _
      $region10: #{self_attn_pallas.2} parent=5 // pred_check_branch
        %206 = sbr.rel (%p203) target = $region12
      $region11: #{self_attn_pallas.2} parent=5 // pred_region
        %s207 = ssub.s32 %s13, 1
        // Predicated region
        $region13: #{self_attn_pallas.2} parent=11 // pred_check
          %p208 = pneg %p74
        $region14: #{self_attn_pallas.2} parent=11 // pred_check_branch
          %210 = sbr.rel (%p208) target = $region16
        $region15: #{self_attn_pallas.2} parent=11 // pred_region
          _
        $region16: #{self_attn_pallas.2} parent=11 // pred_fallthru
          _
        // Predicated region
        $region17: #{self_attn_pallas.2} parent=11 // pred_check
          %p211 = pneg %p95
        $region18: #{self_attn_pallas.2} parent=11 // pred_check_branch
          %213 = sbr.rel (%p211) target = $region20
        $region19: #{self_attn_pallas.2} parent=11 // pred_region
          _
        $region20: #{self_attn_pallas.2} parent=11 // pred_fallthru
          _
        // Predicated region
        $region21: #{self_attn_pallas.2} parent=11 // pred_check
          %p214 = pneg %p116
        $region22: #{self_attn_pallas.2} parent=11 // pred_check_branch
          %216 = sbr.rel (%p214) target = $region24
        $region23: #{self_attn_pallas.2} parent=11 // pred_region
          _
        $region24: #{self_attn_pallas.2} parent=11 // pred_fallthru
          _
        // Predicated region
        $region25: #{self_attn_pallas.2} parent=11 // pred_check
          %p217 = pneg %p137
        $region26: #{self_attn_pallas.2} parent=11 // pred_check_branch
          %219 = sbr.rel (%p217) target = $region28
        $region27: #{self_attn_pallas.2} parent=11 // pred_region
          _
        $region28: #{self_attn_pallas.2} parent=11 // pred_fallthru
          _
      $region12: #{self_attn_pallas.2} parent=5 // pred_fallthru
        _
      %p220 = scmp.lt.s32.totalorder %s13, 4
      // Predicated region
      $region29: #{self_attn_pallas.2} parent=5 // pred_check
        %p221 = pneg %p220
      $region30: #{self_attn_pallas.2} parent=5 // pred_check_branch
        %223 = sbr.rel (%p221) target = $region32
      $region31: #{self_attn_pallas.2} parent=5 // pred_region
        // Predicated region
        $region33: #{self_attn_pallas.2} parent=31 // pred_check
          %p224 = pneg %p47
        $region34: #{self_attn_pallas.2} parent=31 // pred_check_branch
          %226 = sbr.rel (%p224) target = $region36
        $region35: #{self_attn_pallas.2} parent=31 // pred_region
          %s227 = sand.u32 %s37, 1
          %s228 = sand.u32 %s37, 1
          %s229 = smul.addr %s228, 32
          %s230 = scalar_lea.vmem [#allocation2], %s229
          %s231 = smul.addr %s20, 8
          %s232 = sadd.s32 %s21, %s231
          %s233 = smul.addr %s232, 8
          %s234 = scalar_lea.vmem %s0, %s233
          // Predicated region
          $region37: #{self_attn_pallas.2} parent=35 // pred_check
            _
          $region38: #{self_attn_pallas.2} parent=35 // pred_check_branch
            %236 = sbr.rel (0) target = $region40
          $region39: #{self_attn_pallas.2} parent=35 // pred_region
            // Predicated region
            $region41: #{self_attn_pallas.2} parent=39 // pred_check
              _
            $region42: #{self_attn_pallas.2} parent=39 // pred_check_branch
              %238 = sbr.rel (0) target = $region44
            $region43: #{self_attn_pallas.2} parent=39 // pred_region
              // Predicated region
              $region56: #{self_attn_pallas.2} parent=43 // pred_check
                _
              $region57: #{self_attn_pallas.2} parent=43 // pred_check_branch
                %260 = sbr.rel (0) target = $region59
              $region58: #{self_attn_pallas.2} parent=43 // pred_region
                loop: start=0, step=1, limit=1
                $region60: #{self_attn_pallas.2} parent=58 // loop_pre_header
                  _
                $region61: #{self_attn_pallas.2} parent=58 // loop_header
                  %s262 = sphi 0, %s266
                  %p263 = scmp.ge.s32.totalorder %s262, 1
                  %s267 = sphi %s234, %s234
                  %s268 = sphi %s230, %s230
                $region62: #{self_attn_pallas.2} parent=58 // loop_header_branch
                  %265 = sbr.rel (%p263) target = $region66
                $region63: #{self_attn_pallas.2} parent=58 // loop_body
                  %v269 = vld [vmem:[%s267] sm:$0xff]
                  %270 = vst [vmem:[%s268] sm:$0xff] %v269
                  %v271 = vld [vmem:[%s267 + $0x10] sm:$0xff]
                  %272 = vst [vmem:[%s268 + $0x8] sm:$0xff] %v271
                  %v273 = vld [vmem:[%s267 + $0x20] sm:$0xff]
                  %274 = vst [vmem:[%s268 + $0x10] sm:$0xff] %v273
                  %v275 = vld [vmem:[%s267 + $0x30] sm:$0xff]
                  %276 = vst [vmem:[%s268 + $0x18] sm:$0xff] %v275
                $region64: #{self_attn_pallas.2} parent=58 // loop_footer
                  %s266 = sadd.s32 1, %s262
                $region65: #{self_attn_pallas.2} parent=58 // loop_footer_branch
                  %261 = sbr.rel target = $region61
                $region66: #{self_attn_pallas.2} parent=58 // loop_exit
                  _
              $region59: #{self_attn_pallas.2} parent=43 // pred_fallthru
                _
              // Predicated region
              $region67: #{self_attn_pallas.2} parent=43 // pred_check
                _
              $region68: #{self_attn_pallas.2} parent=43 // pred_check_branch
                %278 = sbr.rel target = $region70
              $region69: #{self_attn_pallas.2} parent=43 // pred_region
                _
              $region70: #{self_attn_pallas.2} parent=43 // pred_fallthru
                _
            $region44: #{self_attn_pallas.2} parent=39 // pred_fallthru
              _
            // Predicated region
            $region45: #{self_attn_pallas.2} parent=39 // pred_check
              _
            $region46: #{self_attn_pallas.2} parent=39 // pred_check_branch
              %240 = sbr.rel target = $region48
            $region47: #{self_attn_pallas.2} parent=39 // pred_region
              %s242 = ssub.s32 256, 1
              loop: start=0, step=1, limit=1
              $region49: #{self_attn_pallas.2} parent=47 // loop_pre_header
                _
              $region50: #{self_attn_pallas.2} parent=47 // loop_header
                %s244 = sphi 0, %s248
                %p245 = scmp.ge.s32.totalorder %s244, 1
                %s249 = sphi %s234, %s234
                %s250 = sphi %s230, %s230
              $region51: #{self_attn_pallas.2} parent=47 // loop_header_branch
                %247 = sbr.rel (%p245) target = $region55
              $region52: #{self_attn_pallas.2} parent=47 // loop_body
                %v251 = vld [vmem:[%s249] sm:%s242]
                %252 = vst [vmem:[%s250] sm:%s242] %v251
                %v253 = vld [vmem:[%s249 + $0x10] sm:%s242]
                %254 = vst [vmem:[%s250 + $0x8] sm:%s242] %v253
                %v255 = vld [vmem:[%s249 + $0x20] sm:%s242]
                %256 = vst [vmem:[%s250 + $0x10] sm:%s242] %v255
                %v257 = vld [vmem:[%s249 + $0x30] sm:%s242]
                %258 = vst [vmem:[%s250 + $0x18] sm:%s242] %v257
              $region53: #{self_attn_pallas.2} parent=47 // loop_footer
                %s248 = sadd.s32 1, %s244
              $region54: #{self_attn_pallas.2} parent=47 // loop_footer_branch
                %243 = sbr.rel target = $region50
              $region55: #{self_attn_pallas.2} parent=47 // loop_exit
                _
            $region48: #{self_attn_pallas.2} parent=39 // pred_fallthru
              _
          $region40: #{self_attn_pallas.2} parent=35 // pred_fallthru
            _
          %279 = vnop
        $region36: #{self_attn_pallas.2} parent=31 // pred_fallthru
          _
      $region32: #{self_attn_pallas.2} parent=5 // pred_fallthru
        _
      %p280 = scmp.le.s32.totalorder 1, %s13
      %p281 = scmp.lt.s32.totalorder %s13, 5
      %p282 = pnand %p280, %p281
      %p283 = pneg %p282
      // Predicated region
      $region71: #{self_attn_pallas.2} parent=5 // pred_check
        _
      $region72: #{self_attn_pallas.2} parent=5 // pred_check_branch
        %285 = sbr.rel (%p282) target = $region74
      $region73: #{self_attn_pallas.2} parent=5 // pred_region
        %s286 = ssub.s32 %s13, 1
        %s287 = sand.u32 %s40, 1
        %s288 = sand.u32 %s40, 1
        %s289 = smul.addr %s288, 32
        %s290 = scalar_lea.vmem [#allocation2], %s289
        // Predicated region
        $region75: #{self_attn_pallas.2} parent=73 // pred_check
          %p291 = pneg %p53
        $region76: #{self_attn_pallas.2} parent=73 // pred_check_branch
          %293 = sbr.rel (%p291) target = $region78
        $region77: #{self_attn_pallas.2} parent=73 // pred_region
          _
        $region78: #{self_attn_pallas.2} parent=73 // pred_fallthru
          _
        %s294 = sand.u32 %s40, 1
        %s295 = sand.u32 %s40, 1
        %s296 = smul.addr %s295, 32
        %s297 = scalar_lea.vmem [#allocation2], %s296
        %p298 = pneg %p53
        %p299 = pneg %p50
        %p300 = pneg %p74
        %p301 = pneg %p71
        %p302 = pneg %p95
        %p303 = pneg %p92
        %p304 = pneg %p116
        %p305 = pneg %p113
        %p306 = pneg %p137
        %p307 = pneg %p134
        %p308 = pneg %p165
        %p309 = pneg %p162
        %p310 = scmp.lt.s32.totalorder %s22, 1
        %s311 = scalar_select %p310, %s22, 1
        %p312 = scmp.lt.s32.totalorder %s23, 1
        %s313 = scalar_select %p312, %s23, 1
        %s314 = smul.addr %s311, 2
        %s315 = sadd.s32 %s313, %s314
        %s316 = smul.addr %s315, 2
        %s317 = scalar_lea.vmem %s5, %s316
        %p318 = pneg %p193
        %p319 = pneg %p190
        %s320 = sand.u32 %s180, 1
        %s321 = sand.u32 %s180, 1
        %s322 = smul.addr %s321, 16
        %s323 = scalar_lea.vmem [#allocation3], %s322
        %p324 = scmp.lt.s32.totalorder %s22, 1
        %s325 = scalar_select %p324, %s22, 1
        %p326 = scmp.lt.s32.totalorder %s23, 1
        %s327 = scalar_select %p326, %s23, 1
        %s328 = smul.addr %s325, 2
        %s329 = sadd.s32 %s327, %s328
        %s330 = smul.addr %s329, 2
        %s331 = scalar_lea.vmem %s5, %s330
        %v333 = vld [vmem:[%s290] sm:$0xff]
        %v334 = vld [vmem:[%s290 + $0x8] sm:$0xff]
        %v335 = vld [vmem:[%s290 + $0x10] sm:$0xff]
        %v336 = vld [vmem:[%s290 + $0x18] sm:$0xff]
        %v337 = vpack.c.bf16 %v334, %v333
        %v338 = vpack.c.bf16 %v336, %v335
        %v339 = vld [vmem:[%s1] sm:$0x3]
        %v340 = vld [vmem:[%s2] sm:$0xf]
        %342 = vset.pattern.permute.xlu0 0
        %343 = vperm.xlu0 %342, %v340
        %v344 = vpop.permute.xlu0 %343
        %vm346 = vcmask 261120
        %v348 = vsel %vm346, %v339, 0
        %350 = vmatprep.subr.bf16.mxu0 0
        %351 = vmatpush1.bf16.msra.mxu0 0
        %352 = vmatprep.subr.bf16.mxu0 0
        %353 = vmatpush1.bf16.msra.mxu0 0
        %354 = vmatprep.subr.bf16.mxu0 0
        %355 = vmatpush1.bf16.msra.mxu0 0
        %356 = vmatprep.subr.bf16.mxu0 0
        %357 = vmatpush1.bf16.msra.mxu0 0
        %358 = vmatprep.subr.bf16.mxu0 0
        %359 = vmatpush1.bf16.msra.mxu0 0
        %360 = vmatprep.subr.bf16.mxu0 0
        %361 = vmatpush1.bf16.msra.mxu0 0
        %362 = vmatprep.subr.bf16.mxu0 0
        %363 = vmatpush1.bf16.msra.mxu0 %v338
        %364 = vmatprep.subr.bf16.mxu0 0
        %365 = vmatpush1.bf16.msra.mxu0 %v337
        %366 = vmatprep.subr.bf16.mxu0 0
        %367 = vmatpush2.bf16.msra.mxu0 0
        %368 = vmatprep.subr.bf16.mxu0 0
        %369 = vmatpush2.bf16.msra.mxu0 0
        %370 = vmatprep.subr.bf16.mxu0 0
        %371 = vmatpush2.bf16.msra.mxu0 0
        %372 = vmatprep.subr.bf16.mxu0 0
        %373 = vmatpush2.bf16.msra.mxu0 0
        %374 = vmatprep.subr.bf16.mxu0 0
        %375 = vmatpush2.bf16.msra.mxu0 0
        %376 = vmatprep.subr.bf16.mxu0 0
        %377 = vmatpush2.bf16.msra.mxu0 0
        %378 = vmatprep.subr.bf16.mxu0 0
        %379 = vmatpush2.bf16.msra.mxu0 0
        %380 = vmatprep.subr.bf16.mxu0 0
        %381 = vmatpush2.bf16.msra.mxu0 0
        %382 = vmatprep.mubr.bf16.mxu0 0
        %383 = vmatmul.mubr.bf16.gmra.mxu0 %v348
        %v384 = vpop.f32.mrf.mxu0
        %v385 = vadd.f32 %v344, %v384
        %v386 = vpop.f32.mrf.mxu0
        %v387 = vpop.f32.mrf.mxu0
        %v388 = vpop.f32.mrf.mxu0
        %389 = vdwg.mxu0
        %v390 = vld [vmem:[%s3] sm:$0xf]
        %v391 = vld [vmem:[%s3 + $0x4] sm:$0xf]
        %v392 = vld [vmem:[%s3 + $0x8] sm:$0xf]
        %v393 = vld [vmem:[%s3 + $0xc] sm:$0xf]
        %v394 = vld [vmem:[%s4] sm:$0xff]
        %v395 = vld [vmem:[%s4 + $0x8] sm:$0xff]
        %v396 = vld [vmem:[%s4 + $0x10] sm:$0xff]
        %v397 = vld [vmem:[%s4 + $0x18] sm:$0xff]
        %399 = vset.pattern.permute.xlu0 0
        %400 = vperm.xlu0 %399, %v394
        %v401 = vpop.permute.xlu0 %400
        %404 = vset.pattern.permute.xlu0 0
        %405 = vperm.xlu0 %404, %v395
        %v406 = vpop.permute.xlu0 %405
        %409 = vset.pattern.permute.xlu0 0
        %410 = vperm.xlu0 %409, %v396
        %v411 = vpop.permute.xlu0 %410
        %414 = vset.pattern.permute.xlu0 0
        %415 = vperm.xlu0 %414, %v397
        %v416 = vpop.permute.xlu0 %415
        %v422 = vunpack.c.l.b16 %v390
        %v423 = vunpack.c.l.b16 %v391
        %v424 = vunpack.c.l.b16 %v392
        %v425 = vunpack.c.l.b16 %v393
        %v426 = vpack.c.b16 %v423, %v422
        %v427 = vpack.c.b16 %v425, %v424
        %v429 = vsel %vm346, %v426, 0
        %v432 = vsel %vm346, %v427, 0
        %434 = vmatprep.subr.bf16.mxu0 0
        %435 = vmatpush1.bf16.msra.mxu0 0
        %436 = vmatprep.subr.bf16.mxu0 0
        %437 = vmatpush1.bf16.msra.mxu0 0
        %438 = vmatprep.subr.bf16.mxu0 0
        %439 = vmatpush1.bf16.msra.mxu0 0
        %440 = vmatprep.subr.bf16.mxu0 0
        %441 = vmatpush1.bf16.msra.mxu0 0
        %442 = vmatprep.subr.bf16.mxu0 0
        %443 = vmatpush1.bf16.msra.mxu0 0
        %444 = vmatprep.subr.bf16.mxu0 0
        %445 = vmatpush1.bf16.msra.mxu0 0
        %446 = vmatprep.subr.bf16.mxu0 0
        %447 = vmatpush1.bf16.msra.mxu0 %v338
        %448 = vmatprep.subr.bf16.mxu0 0
        %449 = vmatpush1.bf16.msra.mxu0 %v337
        %450 = vmatprep.subr.bf16.mxu0 0
        %451 = vmatpush2.bf16.msra.mxu0 0
        %452 = vmatprep.subr.bf16.mxu0 0
        %453 = vmatpush2.bf16.msra.mxu0 0
        %454 = vmatprep.subr.bf16.mxu0 0
        %455 = vmatpush2.bf16.msra.mxu0 0
        %456 = vmatprep.subr.bf16.mxu0 0
        %457 = vmatpush2.bf16.msra.mxu0 0
        %458 = vmatprep.subr.bf16.mxu0 0
        %459 = vmatpush2.bf16.msra.mxu0 0
        %460 = vmatprep.subr.bf16.mxu0 0
        %461 = vmatpush2.bf16.msra.mxu0 0
        %462 = vmatprep.subr.bf16.mxu0 0
        %463 = vmatpush2.bf16.msra.mxu0 0
        %464 = vmatprep.subr.bf16.mxu0 0
        %465 = vmatpush2.bf16.msra.mxu0 0
        %466 = vmatprep.mubr.bf16.mxu0 0
        %467 = vmatmul.mubr.bf16.gmra.mxu0 %v429
        %v468 = vpop.f32.mrf.mxu0
        %v469 = vadd.f32 %v401, %v468
        %v470 = vpop.f32.mrf.mxu0
        %v471 = vpop.f32.mrf.mxu0
        %v472 = vadd.f32 %v406, %v471
        %v473 = vpop.f32.mrf.mxu0
        %474 = vmatprep.mubr.bf16.mxu0 0
        %475 = vmatmul.mubr.bf16.gmra.mxu0 %v432
        %v476 = vpop.f32.mrf.mxu0
        %v477 = vadd.f32 %v411, %v476
        %v478 = vpop.f32.mrf.mxu0
        %v479 = vpop.f32.mrf.mxu0
        %v480 = vadd.f32 %v416, %v479
        %v481 = vpop.f32.mrf.mxu0
        %482 = vdwg.mxu0
        %v483 = vpack.c.bf16 %v385, %v385
        %484 = vst [vmem:[%s331] sm:$0x3] %v483
        %v485 = vpack.c.bf16 %v472, %v469
        %v486 = vpack.c.bf16 %v480, %v477
        %v489 = vunpack.c.l.b16 %v485
        %v490 = vunpack.c.h.b16 %v485
        %v491 = vunpack.c.l.b16 %v486
        %v492 = vunpack.c.h.b16 %v486
        %v493 = vpack.c.b16 %v489, %v489
        %v494 = vpack.c.b16 %v490, %v490
        %v495 = vpack.c.b16 %v491, %v491
        %v496 = vpack.c.b16 %v492, %v492
        %501 = vst [vmem:[%s323] sm:$0xf] %v493
        %502 = vst [vmem:[%s323 + $0x4] sm:$0xf] %v494
        %503 = vst [vmem:[%s323 + $0x8] sm:$0xf] %v495
        %504 = vst [vmem:[%s323 + $0xc] sm:$0xf] %v496
        %p505 = scmp.lt.s32.totalorder %s22, 1
        %s506 = scalar_select %p505, %s22, 1
        %p507 = scmp.lt.s32.totalorder %s23, 1
        %s508 = scalar_select %p507, %s23, 1
        %s509 = smul.addr %s506, 2
        %s510 = sadd.s32 %s508, %s509
        %s511 = smul.addr %s510, 2
        %s512 = scalar_lea.vmem %s5, %s511
        %s513 = sand.u32 %s180, 1
        %s514 = sand.u32 %s180, 1
        %s515 = smul.addr %s514, 16
        %s516 = scalar_lea.vmem [#allocation3], %s515
        // Predicated region
        $region79: #{self_attn_pallas.2} parent=73 // pred_check
          %p517 = pneg %p162
        $region80: #{self_attn_pallas.2} parent=73 // pred_check_branch
          %519 = sbr.rel (%p517) target = $region82
        $region81: #{self_attn_pallas.2} parent=73 // pred_region
          _
        $region82: #{self_attn_pallas.2} parent=73 // pred_fallthru
          _
        // Predicated region
        $region83: #{self_attn_pallas.2} parent=73 // pred_check
          %p520 = pneg %p190
        $region84: #{self_attn_pallas.2} parent=73 // pred_check_branch
          %522 = sbr.rel (%p520) target = $region86
        $region85: #{self_attn_pallas.2} parent=73 // pred_region
          %s523 = smul.addr %s22, 8
          %s524 = sadd.s32 %s23, %s523
          %s525 = smul.addr %s524, 4
          %s526 = scalar_lea.vmem %s6, %s525
          // Predicated region
          $region87: #{self_attn_pallas.2} parent=85 // pred_check
            _
          $region88: #{self_attn_pallas.2} parent=85 // pred_check_branch
            %528 = sbr.rel (0) target = $region90
          $region89: #{self_attn_pallas.2} parent=85 // pred_region
            // Predicated region
            $region91: #{self_attn_pallas.2} parent=89 // pred_check
              _
            $region92: #{self_attn_pallas.2} parent=89 // pred_check_branch
              %530 = sbr.rel target = $region94
            $region93: #{self_attn_pallas.2} parent=89 // pred_region
              // Predicated region
              $region106: #{self_attn_pallas.2} parent=93 // pred_check
                _
              $region107: #{self_attn_pallas.2} parent=93 // pred_check_branch
                %552 = sbr.rel (0) target = $region109
              $region108: #{self_attn_pallas.2} parent=93 // pred_region
                loop: start=0, step=1, limit=1
                $region110: #{self_attn_pallas.2} parent=108 // loop_pre_header
                  _
                $region111: #{self_attn_pallas.2} parent=108 // loop_header
                  %s554 = sphi 0, %s558
                  %p555 = scmp.ge.s32.totalorder %s554, 1
                  %s559 = sphi %s516, %s516
                  %s560 = sphi %s526, %s526
                $region112: #{self_attn_pallas.2} parent=108 // loop_header_branch
                  %557 = sbr.rel (%p555) target = $region116
                $region113: #{self_attn_pallas.2} parent=108 // loop_body
                  _
                $region114: #{self_attn_pallas.2} parent=108 // loop_footer
                  %s558 = sadd.s32 1, %s554
                $region115: #{self_attn_pallas.2} parent=108 // loop_footer_branch
                  %553 = sbr.rel target = $region111
                $region116: #{self_attn_pallas.2} parent=108 // loop_exit
                  _
                %s562 = ssub.s32 16, 1
                loop: start=0, step=1, limit=1
                $region117: #{self_attn_pallas.2} parent=108 // loop_pre_header
                  _
                $region118: #{self_attn_pallas.2} parent=108 // loop_header
                  %s564 = sphi 0, %s568
                  %p565 = scmp.ge.s32.totalorder %s564, 1
                  %s569 = sphi %s516, %s516
                  %s570 = sphi %s526, %s526
                $region119: #{self_attn_pallas.2} parent=108 // loop_header_branch
                  %567 = sbr.rel (%p565) target = $region123
                $region120: #{self_attn_pallas.2} parent=108 // loop_body
                  %v571 = vld [vmem:[%s569] sm:%s562]
                  %572 = vst [vmem:[%s570] sm:%s562] %v571
                  %v573 = vld [vmem:[%s569 + $0x4] sm:%s562]
                  %574 = vst [vmem:[%s570 + $0x8] sm:%s562] %v573
                  %v575 = vld [vmem:[%s569 + $0x8] sm:%s562]
                  %576 = vst [vmem:[%s570 + $0x10] sm:%s562] %v575
                  %v577 = vld [vmem:[%s569 + $0xc] sm:%s562]
                  %578 = vst [vmem:[%s570 + $0x18] sm:%s562] %v577
                $region121: #{self_attn_pallas.2} parent=108 // loop_footer
                  %s568 = sadd.s32 1, %s564
                $region122: #{self_attn_pallas.2} parent=108 // loop_footer_branch
                  %563 = sbr.rel target = $region118
                $region123: #{self_attn_pallas.2} parent=108 // loop_exit
                  _
              $region109: #{self_attn_pallas.2} parent=93 // pred_fallthru
                _
            $region94: #{self_attn_pallas.2} parent=89 // pred_fallthru
              _
            // Predicated region
            $region95: #{self_attn_pallas.2} parent=89 // pred_check
              _
            $region96: #{self_attn_pallas.2} parent=89 // pred_check_branch
              %532 = sbr.rel (0) target = $region98
            $region97: #{self_attn_pallas.2} parent=89 // pred_region
              %s534 = ssub.s32 16, 1
              loop: start=0, step=1, limit=1
              $region99: #{self_attn_pallas.2} parent=97 // loop_pre_header
                _
              $region100: #{self_attn_pallas.2} parent=97 // loop_header
                %s536 = sphi 0, %s540
                %p537 = scmp.ge.s32.totalorder %s536, 1
                %s541 = sphi %s516, %s516
                %s542 = sphi %s526, %s526
              $region101: #{self_attn_pallas.2} parent=97 // loop_header_branch
                %539 = sbr.rel (%p537) target = $region105
              $region102: #{self_attn_pallas.2} parent=97 // loop_body
                %v543 = vld [vmem:[%s541] sm:%s534]
                %544 = vst [vmem:[%s542] sm:%s534] %v543
                %v545 = vld [vmem:[%s541 + $0x4] sm:%s534]
                %546 = vst [vmem:[%s542 + $0x8] sm:%s534] %v545
                %v547 = vld [vmem:[%s541 + $0x8] sm:%s534]
                %548 = vst [vmem:[%s542 + $0x10] sm:%s534] %v547
                %v549 = vld [vmem:[%s541 + $0xc] sm:%s534]
                %550 = vst [vmem:[%s542 + $0x18] sm:%s534] %v549
              $region103: #{self_attn_pallas.2} parent=97 // loop_footer
                %s540 = sadd.s32 1, %s536
              $region104: #{self_attn_pallas.2} parent=97 // loop_footer_branch
                %535 = sbr.rel target = $region100
              $region105: #{self_attn_pallas.2} parent=97 // loop_exit
                _
            $region98: #{self_attn_pallas.2} parent=89 // pred_fallthru
              _
          $region90: #{self_attn_pallas.2} parent=85 // pred_fallthru
            _
          %579 = vnop
        $region86: #{self_attn_pallas.2} parent=73 // pred_fallthru
          _
      $region74: #{self_attn_pallas.2} parent=5 // pred_fallthru
        _
      %p580 = scmp.le.s32.totalorder 2, %s13
      // Predicated region
      $region124: #{self_attn_pallas.2} parent=5 // pred_check
        %p581 = pneg %p580
      $region125: #{self_attn_pallas.2} parent=5 // pred_check_branch
        %583 = sbr.rel (%p581) target = $region127
      $region126: #{self_attn_pallas.2} parent=5 // pred_region
        %s584 = ssub.s32 %s13, 2
        // Predicated region
        $region128: #{self_attn_pallas.2} parent=126 // pred_check
          %p585 = pneg %p168
        $region129: #{self_attn_pallas.2} parent=126 // pred_check_branch
          %587 = sbr.rel (%p585) target = $region131
        $region130: #{self_attn_pallas.2} parent=126 // pred_region
          %p588 = scmp.lt.s32.totalorder %s24, 1
          %s589 = scalar_select %p588, %s24, 1
          %p590 = scmp.lt.s32.totalorder %s25, 1
          %s591 = scalar_select %p590, %s25, 1
          %s592 = smul.addr %s589, 2
          %s593 = sadd.s32 %s591, %s592
          %s594 = smul.addr %s593, 2
          %s595 = scalar_lea.vmem %s5, %s594
        $region131: #{self_attn_pallas.2} parent=126 // pred_fallthru
          _
        // Predicated region
        $region132: #{self_attn_pallas.2} parent=126 // pred_check
          %p596 = pneg %p196
        $region133: #{self_attn_pallas.2} parent=126 // pred_check_branch
          %598 = sbr.rel (%p596) target = $region135
        $region134: #{self_attn_pallas.2} parent=126 // pred_region
          %s599 = sand.u32 %s181, 1
          %s600 = sand.u32 %s181, 1
          %s601 = smul.addr %s600, 16
          %s602 = scalar_lea.vmem [#allocation3], %s601
        $region135: #{self_attn_pallas.2} parent=126 // pred_fallthru
          _
      $region127: #{self_attn_pallas.2} parent=5 // pred_fallthru
        _
    $region6: #{self_attn_pallas.2} parent=1 // loop_footer
      %s17 = sadd.s32 1, %s13
    $region7: #{self_attn_pallas.2} parent=1 // loop_footer_branch
      %12 = sbr.rel target = $region3
    $region8: #{self_attn_pallas.2} parent=1 // loop_exit
      _

// kernel: self_attn_pallas.3
$region0: #{self_attn_pallas.3}
  #allocation0 [shape = 'u32[]', space=smem, size = 0x4, offset = 0x4, fixed_abs, tag = 'smem constant byte address 0x4 - core index']
  #allocation1 [shape = 'u32[144,128]{1,0:T(1,128)}', space=vmem, size = 0x12000, scoped, tag = 'internal scratch']
  #allocation2 [shape = 'f32[1,1]{1,0:T(1,128)S(6)}', space=smem, size = 0x200, scoped, tag = 'scoped memory for self_attn_pallas.3']
  %s0 = inlined_call_operand.vmem [shape: f32[2,32,256], index: 0, kind: input, shape index: {}]
  %s1 = inlined_call_operand.vmem [shape: bf16[2,4,256], index: 1, kind: input, shape index: {}]
  %s2 = inlined_call_operand.vmem [shape: bf16[2,32,256], index: 2, kind: input, shape index: {}]
  %s3 = inlined_call_operand.vmem [shape: bf16[4,32], index: 3, kind: input, shape index: {}]
  %s4 = inlined_call_operand.vmem [shape: f32[4,1], index: 4, kind: input, shape index: {}]
  %s5 = inlined_call_operand.<no memory space> [shape: f32[1,1], index: 5, kind: input, shape index: {}]
  %s6 = inlined_call_operand.vmem [shape: f32[2,32,256], index: 6, kind: output, shape index: {0}]
  %s7 = inlined_call_operand.hbm [shape: bf16[2,256,256], index: 7, kind: output, shape index: {1}]
  %8 = xla_tuple %s6, %s7
  %s9 = sld [smem:[#allocation0]]
  $region137: #{self_attn_pallas.3} parent=0
    _
  %s11 = ssub.s32 1, %s9
  %s12 = scalar_select 0, %s11, %s9
  %13 = sst [smem:[#allocation2]] %s5
  $region1: #{self_attn_pallas.3} parent=0
    #allocation3 [shape = 'u8[32768]{0}', space=vmem, size = 0x8000, scoped, tag = 'input window, operand 0']
    #allocation4 [shape = 'u8[32768]{0}', space=vmem, size = 0x8000, scoped, tag = 'output window, operand 0']
    #allocation5 [shape = 'u8[131072]{0}', space=vmem, size = 0x20000, scoped, tag = 'output window, operand 1']
    #allocation6 [shape = 's32[2]{0}', space=sflag, size = 0x8, scoped, tag = 'scoped memory for self_attn_pallas.3']
    %14 = vsyncpa [#allocation6], 0
    %s15 = scalar_lea.sflag [#allocation6], 1
    %16 = vsyncpa %s15, 0
    loop: start=0, step=1, limit=6
    $region2: #{self_attn_pallas.3} parent=1 // loop_pre_header
      _
    $region3: #{self_attn_pallas.3} parent=1 // loop_header
      %s18 = sphi 0, %s22
      %p19 = scmp.ge.s32.totalorder %s18, 6
      %s25 = sphi 0, %s37
      %s26 = sphi 0, %s33
      %s27 = sphi 0, %s25
      %s28 = sphi 0, %s26
      %s29 = sphi 0, %s27
      %s30 = sphi 0, %s28
      %s42 = sphi 0, %s44
      %s45 = sphi 0, %s42
      %s46 = sphi 0, %s45
      %s62 = sphi 0, %s46
      %s68 = sphi 0, %s70
      %s71 = sphi 0, %s68
      %s72 = sphi 0, %s71
      %s88 = sphi 0, %s72
      %s94 = sphi 0, %s96
      %s97 = sphi 0, %s94
      %s98 = sphi 0, %s97
      %s114 = sphi 0, %s98
      %s118 = sphi 0, %s118
      %s120 = sphi 0, %s118
      %s121 = sphi 0, %s120
      %s135 = sphi 0, %s121
      %s139 = sphi 0, %s139
      %s141 = sphi 0, %s139
      %s142 = sphi 0, %s141
      %s156 = sphi 0, %s142
      %s160 = sphi 0, %s160
      %s162 = sphi 0, %s160
      %s163 = sphi 0, %s162
      %s177 = sphi 0, %s163
      %s185 = sphi 0, %s187
      %s188 = sphi 0, %s185
      %s189 = sphi 0, %s188
      %s205 = sphi 0, %s189
      %s213 = sphi 0, %s215
      %s216 = sphi 0, %s213
      %s217 = sphi 0, %s216
      %s233 = sphi 0, %s217
    $region4: #{self_attn_pallas.3} parent=1 // loop_header_branch
      %21 = sbr.rel (%p19) target = $region8
    $region5: #{self_attn_pallas.3} parent=1 // loop_body
      %s23 = ssub.s32 %s18, 1
      %s24 = ssub.s32 %s18, 2
      %s31 = sadd.s32 1, %s26
      %p32 = scmp.ge.s32.totalorder %s31, 2
      %s33 = scalar_select %p32, 0, %s31
      %s34 = sadd.s32 1, %s25
      %s35 = scalar_select %p32, %s34, %s25
      %p36 = scmp.ge.s32.totalorder %s35, 2
      %s37 = scalar_select %p36, 0, %s35
      %s38 = ssub.s32 %s25, %s37
      %s39 = ssub.s32 %s26, %s33
      %s40 = sor.u32 %s38, %s39
      %p41 = scmp.eq.s32.totalorder %s40, 0
      %s43 = sadd.s32 %s42, 1
      %s44 = scalar_select %p41, %s42, %s43
      %p47 = pneg %p41
      %p48 = scmp.eq.s32.totalorder %s18, 3
      %p49 = por %p47, %p48
      %p50 = scmp.ne.s32.totalorder %s42, %s45
      %p51 = scmp.eq.s32.totalorder %s18, 0
      %p52 = por %p50, %p51
      %p53 = scmp.ne.s32.totalorder %s42, %s45
      %p54 = scmp.eq.s32.totalorder %s23, 3
      %p55 = por %p53, %p54
      %p56 = scmp.ne.s32.totalorder %s45, %s46
      %p57 = scmp.eq.s32.totalorder %s23, 0
      %p58 = por %p56, %p57
      %p59 = scmp.ne.s32.totalorder %s45, %s46
      %p60 = scmp.eq.s32.totalorder %s24, 3
      %p61 = por %p59, %p60
      %p63 = scmp.ne.s32.totalorder %s46, %s62
      %p64 = scmp.eq.s32.totalorder %s24, 0
      %p65 = por %p63, %p64
      %s66 = ssub.s32 %s25, %s37
      %p67 = scmp.eq.s32.totalorder %s66, 0
      %s69 = sadd.s32 %s68, 1
      %s70 = scalar_select %p67, %s68, %s69
      %p73 = pneg %p67
      %p74 = scmp.eq.s32.totalorder %s18, 3
      %p75 = por %p73, %p74
      %p76 = scmp.ne.s32.totalorder %s68, %s71
      %p77 = scmp.eq.s32.totalorder %s18, 0
      %p78 = por %p76, %p77
      %p79 = scmp.ne.s32.totalorder %s68, %s71
      %p80 = scmp.eq.s32.totalorder %s23, 3
      %p81 = por %p79, %p80
      %p82 = scmp.ne.s32.totalorder %s71, %s72
      %p83 = scmp.eq.s32.totalorder %s23, 0
      %p84 = por %p82, %p83
      %p85 = scmp.ne.s32.totalorder %s71, %s72
      %p86 = scmp.eq.s32.totalorder %s24, 3
      %p87 = por %p85, %p86
      %p89 = scmp.ne.s32.totalorder %s72, %s88
      %p90 = scmp.eq.s32.totalorder %s24, 0
      %p91 = por %p89, %p90
      %s92 = ssub.s32 %s25, %s37
      %p93 = scmp.eq.s32.totalorder %s92, 0
      %s95 = sadd.s32 %s94, 1
      %s96 = scalar_select %p93, %s94, %s95
      %p99 = pneg %p93
      %p100 = scmp.eq.s32.totalorder %s18, 3
      %p101 = por %p99, %p100
      %p102 = scmp.ne.s32.totalorder %s94, %s97
      %p103 = scmp.eq.s32.totalorder %s18, 0
      %p104 = por %p102, %p103
      %p105 = scmp.ne.s32.totalorder %s94, %s97
      %p106 = scmp.eq.s32.totalorder %s23, 3
      %p107 = por %p105, %p106
      %p108 = scmp.ne.s32.totalorder %s97, %s98
      %p109 = scmp.eq.s32.totalorder %s23, 0
      %p110 = por %p108, %p109
      %p111 = scmp.ne.s32.totalorder %s97, %s98
      %p112 = scmp.eq.s32.totalorder %s24, 3
      %p113 = por %p111, %p112
      %p115 = scmp.ne.s32.totalorder %s98, %s114
      %p116 = scmp.eq.s32.totalorder %s24, 0
      %p117 = por %p115, %p116
      %s119 = sadd.s32 %s118, 1
      %p122 = scmp.eq.s32.totalorder %s18, 3
      %p123 = scmp.ne.s32.totalorder %s118, %s120
      %p124 = scmp.eq.s32.totalorder %s18, 0
      %p125 = por %p123, %p124
      %p126 = scmp.ne.s32.totalorder %s118, %s120
      %p127 = scmp.eq.s32.totalorder %s23, 3
      %p128 = por %p126, %p127
      %p129 = scmp.ne.s32.totalorder %s120, %s121
      %p130 = scmp.eq.s32.totalorder %s23, 0
      %p131 = por %p129, %p130
      %p132 = scmp.ne.s32.totalorder %s120, %s121
      %p133 = scmp.eq.s32.totalorder %s24, 3
      %p134 = por %p132, %p133
      %p136 = scmp.ne.s32.totalorder %s121, %s135
      %p137 = scmp.eq.s32.totalorder %s24, 0
      %p138 = por %p136, %p137
      %s140 = sadd.s32 %s139, 1
      %p143 = scmp.eq.s32.totalorder %s18, 3
      %p144 = scmp.ne.s32.totalorder %s139, %s141
      %p145 = scmp.eq.s32.totalorder %s18, 0
      %p146 = por %p144, %p145
      %p147 = scmp.ne.s32.totalorder %s139, %s141
      %p148 = scmp.eq.s32.totalorder %s23, 3
      %p149 = por %p147, %p148
      %p150 = scmp.ne.s32.totalorder %s141, %s142
      %p151 = scmp.eq.s32.totalorder %s23, 0
      %p152 = por %p150, %p151
      %p153 = scmp.ne.s32.totalorder %s141, %s142
      %p154 = scmp.eq.s32.totalorder %s24, 3
      %p155 = por %p153, %p154
      %p157 = scmp.ne.s32.totalorder %s142, %s156
      %p158 = scmp.eq.s32.totalorder %s24, 0
      %p159 = por %p157, %p158
      %s161 = sadd.s32 %s160, 1
      %p164 = scmp.eq.s32.totalorder %s18, 3
      %p165 = scmp.ne.s32.totalorder %s160, %s162
      %p166 = scmp.eq.s32.totalorder %s18, 0
      %p167 = por %p165, %p166
      %p168 = scmp.ne.s32.totalorder %s160, %s162
      %p169 = scmp.eq.s32.totalorder %s23, 3
      %p170 = por %p168, %p169
      %p171 = scmp.ne.s32.totalorder %s162, %s163
      %p172 = scmp.eq.s32.totalorder %s23, 0
      %p173 = por %p171, %p172
      %p174 = scmp.ne.s32.totalorder %s162, %s163
      %p175 = scmp.eq.s32.totalorder %s24, 3
      %p176 = por %p174, %p175
      %p178 = scmp.ne.s32.totalorder %s163, %s177
      %p179 = scmp.eq.s32.totalorder %s24, 0
      %p180 = por %p178, %p179
      %s181 = ssub.s32 %s25, %s37
      %s182 = ssub.s32 %s26, %s33
      %s183 = sor.u32 %s181, %s182
      %p184 = scmp.eq.s32.totalorder %s183, 0
      %s186 = sadd.s32 %s185, 1
      %s187 = scalar_select %p184, %s185, %s186
      %p190 = pneg %p184
      %p191 = scmp.eq.s32.totalorder %s18, 3
      %p192 = por %p190, %p191
      %p193 = scmp.ne.s32.totalorder %s185, %s188
      %p194 = scmp.eq.s32.totalorder %s18, 0
      %p195 = por %p193, %p194
      %p196 = scmp.ne.s32.totalorder %s185, %s188
      %p197 = scmp.eq.s32.totalorder %s23, 3
      %p198 = por %p196, %p197
      %p199 = scmp.ne.s32.totalorder %s188, %s189
      %p200 = scmp.eq.s32.totalorder %s23, 0
      %p201 = por %p199, %p200
      %p202 = scmp.ne.s32.totalorder %s188, %s189
      %p203 = scmp.eq.s32.totalorder %s24, 3
      %p204 = por %p202, %p203
      %p206 = scmp.ne.s32.totalorder %s189, %s205
      %p207 = scmp.eq.s32.totalorder %s24, 0
      %p208 = por %p206, %p207
      %s209 = ssub.s32 %s25, %s37
      %s210 = ssub.s32 %s26, %s33
      %s211 = sor.u32 %s209, %s210
      %p212 = scmp.eq.s32.totalorder %s211, 0
      %s214 = sadd.s32 %s213, 1
      %s215 = scalar_select %p212, %s213, %s214
      %p218 = pneg %p212
      %p219 = scmp.eq.s32.totalorder %s18, 3
      %p220 = por %p218, %p219
      %p221 = scmp.ne.s32.totalorder %s213, %s216
      %p222 = scmp.eq.s32.totalorder %s18, 0
      %p223 = por %p221, %p222
      %p224 = scmp.ne.s32.totalorder %s213, %s216
      %p225 = scmp.eq.s32.totalorder %s23, 3
      %p226 = por %p224, %p225
      %p227 = scmp.ne.s32.totalorder %s216, %s217
      %p228 = scmp.eq.s32.totalorder %s23, 0
      %p229 = por %p227, %p228
      %p230 = scmp.ne.s32.totalorder %s216, %s217
      %p231 = scmp.eq.s32.totalorder %s24, 3
      %p232 = por %p230, %p231
      %p234 = scmp.ne.s32.totalorder %s217, %s233
      %p235 = scmp.eq.s32.totalorder %s24, 0
      %p236 = por %p234, %p235
      %p237 = scmp.le.s32.totalorder 1, %s18
      %p238 = scmp.lt.s32.totalorder %s18, 5
      %p239 = pnand %p237, %p238
      %p240 = pneg %p239
      // Predicated region
      $region9: #{self_attn_pallas.3} parent=5 // pred_check
        _
      $region10: #{self_attn_pallas.3} parent=5 // pred_check_branch
        %242 = sbr.rel (%p239) target = $region12
      $region11: #{self_attn_pallas.3} parent=5 // pred_region
        %s243 = ssub.s32 %s18, 1
        // Predicated region
        $region13: #{self_attn_pallas.3} parent=11 // pred_check
          %p244 = pneg %p131
        $region14: #{self_attn_pallas.3} parent=11 // pred_check_branch
          %246 = sbr.rel (%p244) target = $region16
        $region15: #{self_attn_pallas.3} parent=11 // pred_region
          _
        $region16: #{self_attn_pallas.3} parent=11 // pred_fallthru
          _
        // Predicated region
        $region17: #{self_attn_pallas.3} parent=11 // pred_check
          %p247 = pneg %p152
        $region18: #{self_attn_pallas.3} parent=11 // pred_check_branch
          %249 = sbr.rel (%p247) target = $region20
        $region19: #{self_attn_pallas.3} parent=11 // pred_region
          _
        $region20: #{self_attn_pallas.3} parent=11 // pred_fallthru
          _
        // Predicated region
        $region21: #{self_attn_pallas.3} parent=11 // pred_check
          %p250 = pneg %p173
        $region22: #{self_attn_pallas.3} parent=11 // pred_check_branch
          %252 = sbr.rel (%p250) target = $region24
        $region23: #{self_attn_pallas.3} parent=11 // pred_region
          _
        $region24: #{self_attn_pallas.3} parent=11 // pred_fallthru
          _
      $region12: #{self_attn_pallas.3} parent=5 // pred_fallthru
        _
      %p253 = scmp.lt.s32.totalorder %s18, 4
      // Predicated region
      $region25: #{self_attn_pallas.3} parent=5 // pred_check
        %p254 = pneg %p253
      $region26: #{self_attn_pallas.3} parent=5 // pred_check_branch
        %256 = sbr.rel (%p254) target = $region28
      $region27: #{self_attn_pallas.3} parent=5 // pred_region
        // Predicated region
        $region29: #{self_attn_pallas.3} parent=27 // pred_check
          %p257 = pneg %p52
        $region30: #{self_attn_pallas.3} parent=27 // pred_check_branch
          %259 = sbr.rel (%p257) target = $region32
        $region31: #{self_attn_pallas.3} parent=27 // pred_region
          %s260 = sand.u32 %s42, 1
          %s261 = sand.u32 %s42, 1
          %s262 = smul.addr %s261, 32
          %s263 = scalar_lea.vmem [#allocation3], %s262
          %s264 = smul.addr %s25, 8
          %s265 = sadd.s32 %s26, %s264
          %s266 = smul.addr %s265, 8
          %s267 = scalar_lea.vmem %s0, %s266
          // Predicated region
          $region33: #{self_attn_pallas.3} parent=31 // pred_check
            _
          $region34: #{self_attn_pallas.3} parent=31 // pred_check_branch
            %269 = sbr.rel (0) target = $region36
          $region35: #{self_attn_pallas.3} parent=31 // pred_region
            // Predicated region
            $region37: #{self_attn_pallas.3} parent=35 // pred_check
              _
            $region38: #{self_attn_pallas.3} parent=35 // pred_check_branch
              %271 = sbr.rel (0) target = $region40
            $region39: #{self_attn_pallas.3} parent=35 // pred_region
              // Predicated region
              $region52: #{self_attn_pallas.3} parent=39 // pred_check
                _
              $region53: #{self_attn_pallas.3} parent=39 // pred_check_branch
                %293 = sbr.rel (0) target = $region55
              $region54: #{self_attn_pallas.3} parent=39 // pred_region
                loop: start=0, step=1, limit=1
                $region56: #{self_attn_pallas.3} parent=54 // loop_pre_header
                  _
                $region57: #{self_attn_pallas.3} parent=54 // loop_header
                  %s295 = sphi 0, %s299
                  %p296 = scmp.ge.s32.totalorder %s295, 1
                  %s300 = sphi %s267, %s267
                  %s301 = sphi %s263, %s263
                $region58: #{self_attn_pallas.3} parent=54 // loop_header_branch
                  %298 = sbr.rel (%p296) target = $region62
                $region59: #{self_attn_pallas.3} parent=54 // loop_body
                  %v302 = vld [vmem:[%s300] sm:$0xff]
                  %303 = vst [vmem:[%s301] sm:$0xff] %v302
                  %v304 = vld [vmem:[%s300 + $0x10] sm:$0xff]
                  %305 = vst [vmem:[%s301 + $0x8] sm:$0xff] %v304
                  %v306 = vld [vmem:[%s300 + $0x20] sm:$0xff]
                  %307 = vst [vmem:[%s301 + $0x10] sm:$0xff] %v306
                  %v308 = vld [vmem:[%s300 + $0x30] sm:$0xff]
                  %309 = vst [vmem:[%s301 + $0x18] sm:$0xff] %v308
                $region60: #{self_attn_pallas.3} parent=54 // loop_footer
                  %s299 = sadd.s32 1, %s295
                $region61: #{self_attn_pallas.3} parent=54 // loop_footer_branch
                  %294 = sbr.rel target = $region57
                $region62: #{self_attn_pallas.3} parent=54 // loop_exit
                  _
              $region55: #{self_attn_pallas.3} parent=39 // pred_fallthru
                _
              // Predicated region
              $region63: #{self_attn_pallas.3} parent=39 // pred_check
                _
              $region64: #{self_attn_pallas.3} parent=39 // pred_check_branch
                %311 = sbr.rel target = $region66
              $region65: #{self_attn_pallas.3} parent=39 // pred_region
                _
              $region66: #{self_attn_pallas.3} parent=39 // pred_fallthru
                _
            $region40: #{self_attn_pallas.3} parent=35 // pred_fallthru
              _
            // Predicated region
            $region41: #{self_attn_pallas.3} parent=35 // pred_check
              _
            $region42: #{self_attn_pallas.3} parent=35 // pred_check_branch
              %273 = sbr.rel target = $region44
            $region43: #{self_attn_pallas.3} parent=35 // pred_region
              %s275 = ssub.s32 256, 1
              loop: start=0, step=1, limit=1
              $region45: #{self_attn_pallas.3} parent=43 // loop_pre_header
                _
              $region46: #{self_attn_pallas.3} parent=43 // loop_header
                %s277 = sphi 0, %s281
                %p278 = scmp.ge.s32.totalorder %s277, 1
                %s282 = sphi %s267, %s267
                %s283 = sphi %s263, %s263
              $region47: #{self_attn_pallas.3} parent=43 // loop_header_branch
                %280 = sbr.rel (%p278) target = $region51
              $region48: #{self_attn_pallas.3} parent=43 // loop_body
                %v284 = vld [vmem:[%s282] sm:%s275]
                %285 = vst [vmem:[%s283] sm:%s275] %v284
                %v286 = vld [vmem:[%s282 + $0x10] sm:%s275]
                %287 = vst [vmem:[%s283 + $0x8] sm:%s275] %v286
                %v288 = vld [vmem:[%s282 + $0x20] sm:%s275]
                %289 = vst [vmem:[%s283 + $0x10] sm:%s275] %v288
                %v290 = vld [vmem:[%s282 + $0x30] sm:%s275]
                %291 = vst [vmem:[%s283 + $0x18] sm:%s275] %v290
              $region49: #{self_attn_pallas.3} parent=43 // loop_footer
                %s281 = sadd.s32 1, %s277
              $region50: #{self_attn_pallas.3} parent=43 // loop_footer_branch
                %276 = sbr.rel target = $region46
              $region51: #{self_attn_pallas.3} parent=43 // loop_exit
                _
            $region44: #{self_attn_pallas.3} parent=35 // pred_fallthru
              _
          $region36: #{self_attn_pallas.3} parent=31 // pred_fallthru
            _
          %312 = vnop
        $region32: #{self_attn_pallas.3} parent=27 // pred_fallthru
          _
        // Predicated region
        $region67: #{self_attn_pallas.3} parent=27 // pred_check
          %p313 = pneg %p78
        $region68: #{self_attn_pallas.3} parent=27 // pred_check_branch
          %315 = sbr.rel (%p313) target = $region70
        $region69: #{self_attn_pallas.3} parent=27 // pred_region
          %p316 = scmp.lt.s32.totalorder %s25, 1
          %s317 = scalar_select %p316, %s25, 1
          %s318 = smul.addr %s317, 2
          %s319 = smul.addr %s318, 2
          %s320 = scalar_lea.vmem %s1, %s319
        $region70: #{self_attn_pallas.3} parent=27 // pred_fallthru
          _
        // Predicated region
        $region71: #{self_attn_pallas.3} parent=27 // pred_check
          %p321 = pneg %p104
        $region72: #{self_attn_pallas.3} parent=27 // pred_check_branch
          %323 = sbr.rel (%p321) target = $region74
        $region73: #{self_attn_pallas.3} parent=27 // pred_region
          %p324 = scmp.lt.s32.totalorder %s25, 1
          %s325 = scalar_select %p324, %s25, 1
          %s326 = smul.addr %s325, 8
          %s327 = smul.addr %s326, 4
          %s328 = scalar_lea.vmem %s2, %s327
        $region74: #{self_attn_pallas.3} parent=27 // pred_fallthru
          _
      $region28: #{self_attn_pallas.3} parent=5 // pred_fallthru
        _
      %p329 = scmp.le.s32.totalorder 1, %s18
      %p330 = scmp.lt.s32.totalorder %s18, 5
      %p331 = pnand %p329, %p330
      %p332 = pneg %p331
      // Predicated region
      $region75: #{self_attn_pallas.3} parent=5 // pred_check
        _
      $region76: #{self_attn_pallas.3} parent=5 // pred_check_branch
        %334 = sbr.rel (%p331) target = $region78
      $region77: #{self_attn_pallas.3} parent=5 // pred_region
        %s335 = ssub.s32 %s18, 1
        %s336 = sand.u32 %s45, 1
        %s337 = sand.u32 %s45, 1
        %s338 = smul.addr %s337, 32
        %s339 = scalar_lea.vmem [#allocation3], %s338
        // Predicated region
        $region79: #{self_attn_pallas.3} parent=77 // pred_check
          %p340 = pneg %p58
        $region80: #{self_attn_pallas.3} parent=77 // pred_check_branch
          %342 = sbr.rel (%p340) target = $region82
        $region81: #{self_attn_pallas.3} parent=77 // pred_region
          _
        $region82: #{self_attn_pallas.3} parent=77 // pred_fallthru
          _
        %s343 = sand.u32 %s45, 1
        %s344 = sand.u32 %s45, 1
        %s345 = smul.addr %s344, 32
        %s346 = scalar_lea.vmem [#allocation3], %s345
        %p347 = pneg %p58
        %p348 = pneg %p55
        %p349 = scmp.lt.s32.totalorder %s27, 1
        %s350 = scalar_select %p349, %s27, 1
        %s351 = smul.addr %s350, 2
        %s352 = smul.addr %s351, 2
        %s353 = scalar_lea.vmem %s1, %s352
        %p354 = pneg %p84
        %p355 = pneg %p81
        %p356 = scmp.lt.s32.totalorder %s27, 1
        %s357 = scalar_select %p356, %s27, 1
        %s358 = smul.addr %s357, 8
        %s359 = smul.addr %s358, 4
        %s360 = scalar_lea.vmem %s2, %s359
        %p361 = pneg %p110
        %p362 = pneg %p107
        %p363 = pneg %p131
        %p364 = pneg %p128
        %p365 = pneg %p152
        %p366 = pneg %p149
        %p367 = pneg %p173
        %p368 = pneg %p170
        %p369 = pneg %p201
        %p370 = pneg %p198
        %s371 = sand.u32 %s188, 1
        %s372 = sand.u32 %s188, 1
        %s373 = smul.addr %s372, 32
        %s374 = scalar_lea.vmem [#allocation4], %s373
        %p375 = pneg %p229
        %p376 = pneg %p226
        %s377 = sand.u32 %s216, 1
        %s378 = scalar_lea.sflag [#allocation6], %s377
        %s379 = sand.u32 %s216, 1
        %s380 = smul.addr %s379, 128
        %s381 = scalar_lea.vmem [#allocation5], %s380
        %p382 = scmp.lt.s32.totalorder %s27, 1
        %s383 = scalar_select %p382, %s27, 1
        %s384 = smul.addr %s383, 2
        %s385 = smul.addr %s384, 2
        %s386 = scalar_lea.vmem %s1, %s385
        %p387 = scmp.lt.s32.totalorder %s27, 1
        %s388 = scalar_select %p387, %s27, 1
        %s389 = smul.addr %s388, 8
        %s390 = smul.addr %s389, 4
        %s391 = scalar_lea.vmem %s2, %s390
        %s392 = smul.u32 16, %s28
        %v394 = vld [vmem:[%s339] sm:$0xff]
        %v395 = vld [vmem:[%s339 + $0x8] sm:$0xff]
        %v396 = vld [vmem:[%s339 + $0x10] sm:$0xff]
        %v397 = vld [vmem:[%s339 + $0x18] sm:$0xff]
        %v398 = vld [vmem:[%s3] sm:$0x3]
        %v399 = vpack.c.bf16 %v395, %v394
        %v400 = vpack.c.bf16 %v397, %v396
        %v401 = vld [vmem:[%s4] sm:$0xf]
        %403 = vset.pattern.permute.xlu0 0
        %404 = vperm.xlu0 %403, %v401
        %v405 = vpop.permute.xlu0 %404
        %vm407 = vcmask 261120
        %v409 = vsel %vm407, %v398, 0
        %411 = vmatprep.subr.bf16.mxu0 0
        %412 = vmatpush1.bf16.msra.mxu0 0
        %413 = vmatprep.subr.bf16.mxu0 0
        %414 = vmatpush1.bf16.msra.mxu0 0
        %415 = vmatprep.subr.bf16.mxu0 0
        %416 = vmatpush1.bf16.msra.mxu0 0
        %417 = vmatprep.subr.bf16.mxu0 0
        %418 = vmatpush1.bf16.msra.mxu0 0
        %419 = vmatprep.subr.bf16.mxu0 0
        %420 = vmatpush1.bf16.msra.mxu0 0
        %421 = vmatprep.subr.bf16.mxu0 0
        %422 = vmatpush1.bf16.msra.mxu0 0
        %423 = vmatprep.subr.bf16.mxu0 0
        %424 = vmatpush1.bf16.msra.mxu0 %v400
        %425 = vmatprep.subr.bf16.mxu0 0
        %426 = vmatpush1.bf16.msra.mxu0 %v399
        %427 = vmatprep.subr.bf16.mxu0 0
        %428 = vmatpush2.bf16.msra.mxu0 0
        %429 = vmatprep.subr.bf16.mxu0 0
        %430 = vmatpush2.bf16.msra.mxu0 0
        %431 = vmatprep.subr.bf16.mxu0 0
        %432 = vmatpush2.bf16.msra.mxu0 0
        %433 = vmatprep.subr.bf16.mxu0 0
        %434 = vmatpush2.bf16.msra.mxu0 0
        %435 = vmatprep.subr.bf16.mxu0 0
        %436 = vmatpush2.bf16.msra.mxu0 0
        %437 = vmatprep.subr.bf16.mxu0 0
        %438 = vmatpush2.bf16.msra.mxu0 0
        %439 = vmatprep.subr.bf16.mxu0 0
        %440 = vmatpush2.bf16.msra.mxu0 0
        %441 = vmatprep.subr.bf16.mxu0 0
        %442 = vmatpush2.bf16.msra.mxu0 0
        %443 = vmatprep.mubr.bf16.mxu0 0
        %444 = vmatmul.mubr.bf16.gmra.mxu0 %v409
        %v445 = vpop.f32.mrf.mxu0
        %v446 = vadd.f32 %v405, %v445
        %v447 = vpop.f32.mrf.mxu0
        %v448 = vpop.f32.mrf.mxu0
        %v449 = vpop.f32.mrf.mxu0
        %450 = vdwg.mxu0
        %v451 = vld [vmem:[%s386] sm:$0xf]
        %v452 = vld [vmem:[%s391] sm:$0xff]
        %v453 = vld [vmem:[%s391 + $0x8] sm:$0xff]
        %v454 = vld [vmem:[%s391 + $0x10] sm:$0xff]
        %v455 = vld [vmem:[%s391 + $0x18] sm:$0xff]
        %v456 = vpack.c.bf16 %v446, %v446
        %457 = vxpose.xlu0.c.b16.start [1/8] %v456, 128
        %458 = vxpose.xlu0.c.b16.cont [2/8] 0, 128
        %459 = vxpose.xlu0.c.b16.cont [3/8] 0, 128
        %460 = vxpose.xlu0.c.b16.cont [4/8] 0, 128
        %461 = vxpose.xlu0.c.b16.cont [5/8] 0, 128
        %462 = vxpose.xlu0.c.b16.cont [6/8] 0, 128
        %463 = vxpose.xlu0.c.b16.cont [7/8] 0, 128
        %464 = vxpose.xlu0.c.b16.end [8/8] 0, 128
        %v465 = vpop.trf.xlu0
        %v466 = vpop.trf.xlu0
        %v467 = vpop.trf.xlu0
        %v468 = vpop.trf.xlu0
        %v469 = vpop.trf.xlu0
        %v470 = vpop.trf.xlu0
        %v471 = vpop.trf.xlu0
        %v472 = vpop.trf.xlu0
        %v475 = vunpack.c.l.s4 1983009808
        %v476 = vunpack.c.0.s8 %v475
        %v477 = vlaneseq
        %v478 = vshrl.u32 %v477, 7
        %v479 = vsub.s32 %v476, %v478
        %v480 = vrot.slane %v451, %v479
        %v481 = vcombine.high %v480, %v480
        %vm482 = vcmask 31744
        %v484 = vsel %vm482, %v465, 0
        %v487 = vsel %vm482, %v466, 0
        %v490 = vsel %vm482, %v467, 0
        %v493 = vsel %vm482, %v468, 0
        %v496 = vsel %vm482, %v469, 0
        %v499 = vsel %vm482, %v470, 0
        %v502 = vsel %vm482, %v471, 0
        %v505 = vsel %vm482, %v472, 0
        %vm507 = vcmask 1041408
        %v509 = vsel %vm507, %v480, 0
        %v512 = vsel %vm507, %v481, 0
        %514 = vmatprep.subr.bf16.mxu0 0
        %515 = vmatpush1.bf16.msra.mxu0 0
        %516 = vmatprep.subr.bf16.mxu0 0
        %517 = vmatpush1.bf16.msra.mxu0 0
        %518 = vmatprep.subr.bf16.mxu0 0
        %519 = vmatpush1.bf16.msra.mxu0 0
        %520 = vmatprep.subr.bf16.mxu0 0
        %521 = vmatpush1.bf16.msra.mxu0 0
        %522 = vmatprep.subr.bf16.mxu0 0
        %523 = vmatpush1.bf16.msra.mxu0 0
        %524 = vmatprep.subr.bf16.mxu0 0
        %525 = vmatpush1.bf16.msra.mxu0 0
        %526 = vmatprep.subr.bf16.mxu0 0
        %527 = vmatpush1.bf16.msra.mxu0 0
        %528 = vmatprep.subr.bf16.mxu0 %v512
        %529 = vmatpush1.bf16.msra.mxu0 %v509
        %530 = vmatprep.subr.bf16.mxu0 0
        %531 = vmatpush2.bf16.msra.mxu0 0
        %532 = vmatprep.subr.bf16.mxu0 0
        %533 = vmatpush2.bf16.msra.mxu0 0
        %534 = vmatprep.subr.bf16.mxu0 0
        %535 = vmatpush2.bf16.msra.mxu0 0
        %536 = vmatprep.subr.bf16.mxu0 0
        %537 = vmatpush2.bf16.msra.mxu0 0
        %538 = vmatprep.subr.bf16.mxu0 0
        %539 = vmatpush2.bf16.msra.mxu0 0
        %540 = vmatprep.subr.bf16.mxu0 0
        %541 = vmatpush2.bf16.msra.mxu0 0
        %542 = vmatprep.subr.bf16.mxu0 0
        %543 = vmatpush2.bf16.msra.mxu0 0
        %544 = vmatprep.subr.bf16.mxu0 0
        %545 = vmatpush2.bf16.msra.mxu0 0
        %546 = vmatprep.mubr.bf16.mxu0 0
        %547 = vmatmul.mubr.bf16.gmra.mxu0 %v484
        %v548 = vpop.f32.mrf.mxu0
        %v549 = vadd.f32 0.0, %v548
        %v550 = vpop.f32.mrf.mxu0
        %v551 = vadd.f32 0.0, %v550
        %v552 = vpop.f32.mrf.mxu0
        %v553 = vadd.f32 0.0, %v552
        %v554 = vpop.f32.mrf.mxu0
        %v555 = vadd.f32 0.0, %v554
        %556 = vmatprep.mubr.bf16.mxu0 0
        %557 = vmatmul.mubr.bf16.gmra.mxu0 %v487
        %v558 = vpop.f32.mrf.mxu0
        %v559 = vadd.f32 0.0, %v558
        %v560 = vpop.f32.mrf.mxu0
        %v561 = vadd.f32 0.0, %v560
        %v562 = vpop.f32.mrf.mxu0
        %v563 = vadd.f32 0.0, %v562
        %v564 = vpop.f32.mrf.mxu0
        %v565 = vadd.f32 0.0, %v564
        %566 = vmatprep.mubr.bf16.mxu0 0
        %567 = vmatmul.mubr.bf16.gmra.mxu0 %v490
        %v568 = vpop.f32.mrf.mxu0
        %v569 = vadd.f32 0.0, %v568
        %v570 = vpop.f32.mrf.mxu0
        %v571 = vadd.f32 0.0, %v570
        %v572 = vpop.f32.mrf.mxu0
        %v573 = vadd.f32 0.0, %v572
        %v574 = vpop.f32.mrf.mxu0
        %v575 = vadd.f32 0.0, %v574
        %576 = vmatprep.mubr.bf16.mxu0 0
        %577 = vmatmul.mubr.bf16.gmra.mxu0 %v493
        %v578 = vpop.f32.mrf.mxu0
        %v579 = vadd.f32 0.0, %v578
        %v580 = vpop.f32.mrf.mxu0
        %v581 = vadd.f32 0.0, %v580
        %v582 = vpop.f32.mrf.mxu0
        %v583 = vadd.f32 0.0, %v582
        %v584 = vpop.f32.mrf.mxu0
        %v585 = vadd.f32 0.0, %v584
        %586 = vmatprep.mubr.bf16.mxu0 0
        %587 = vmatmul.mubr.bf16.gmra.mxu0 %v496
        %v588 = vpop.f32.mrf.mxu0
        %v589 = vadd.f32 0.0, %v588
        %v590 = vpop.f32.mrf.mxu0
        %v591 = vadd.f32 0.0, %v590
        %v592 = vpop.f32.mrf.mxu0
        %v593 = vadd.f32 0.0, %v592
        %v594 = vpop.f32.mrf.mxu0
        %v595 = vadd.f32 0.0, %v594
        %596 = vmatprep.mubr.bf16.mxu0 0
        %597 = vmatmul.mubr.bf16.gmra.mxu0 %v499
        %v598 = vpop.f32.mrf.mxu0
        %v599 = vadd.f32 0.0, %v598
        %v600 = vpop.f32.mrf.mxu0
        %v601 = vadd.f32 0.0, %v600
        %v602 = vpop.f32.mrf.mxu0
        %v603 = vadd.f32 0.0, %v602
        %v604 = vpop.f32.mrf.mxu0
        %v605 = vadd.f32 0.0, %v604
        %606 = vmatprep.mubr.bf16.mxu0 0
        %607 = vmatmul.mubr.bf16.gmra.mxu0 %v502
        %v608 = vpop.f32.mrf.mxu0
        %v609 = vadd.f32 0.0, %v608
        %v610 = vpop.f32.mrf.mxu0
        %v611 = vadd.f32 0.0, %v610
        %v612 = vpop.f32.mrf.mxu0
        %v613 = vadd.f32 0.0, %v612
        %v614 = vpop.f32.mrf.mxu0
        %v615 = vadd.f32 0.0, %v614
        %616 = vmatprep.mubr.bf16.mxu0 0
        %617 = vmatmul.mubr.bf16.gmra.mxu0 %v505
        %v618 = vpop.f32.mrf.mxu0
        %v619 = vadd.f32 0.0, %v618
        %v620 = vpop.f32.mrf.mxu0
        %v621 = vadd.f32 0.0, %v620
        %v622 = vpop.f32.mrf.mxu0
        %v623 = vadd.f32 0.0, %v622
        %v624 = vpop.f32.mrf.mxu0
        %v625 = vadd.f32 0.0, %v624
        %626 = vdwg.mxu0
        %v627 = vmax.f32 %v549, %v551
        %628 = vmax.xlane.f32.xlu0 %v627
        %v629 = vpop.xlane.xlu0 %628
        %v630 = vmax.f32 %v553, %v555
        %631 = vmax.xlane.f32.xlu0 %v630
        %v632 = vpop.xlane.xlu0 %631
        %v633 = vmax.f32 %v559, %v561
        %634 = vmax.xlane.f32.xlu0 %v633
        %v635 = vpop.xlane.xlu0 %634
        %v636 = vmax.f32 %v563, %v565
        %637 = vmax.xlane.f32.xlu0 %v636
        %v638 = vpop.xlane.xlu0 %637
        %v639 = vmax.f32 %v569, %v571
        %640 = vmax.xlane.f32.xlu0 %v639
        %v641 = vpop.xlane.xlu0 %640
        %v642 = vmax.f32 %v573, %v575
        %643 = vmax.xlane.f32.xlu0 %v642
        %v644 = vpop.xlane.xlu0 %643
        %v645 = vmax.f32 %v579, %v581
        %646 = vmax.xlane.f32.xlu0 %v645
        %v647 = vpop.xlane.xlu0 %646
        %v648 = vmax.f32 %v583, %v585
        %649 = vmax.xlane.f32.xlu0 %v648
        %v650 = vpop.xlane.xlu0 %649
        %v651 = vmax.f32 %v589, %v591
        %652 = vmax.xlane.f32.xlu0 %v651
        %v653 = vpop.xlane.xlu0 %652
        %v654 = vmax.f32 %v593, %v595
        %655 = vmax.xlane.f32.xlu0 %v654
        %v656 = vpop.xlane.xlu0 %655
        %v657 = vmax.f32 %v599, %v601
        %658 = vmax.xlane.f32.xlu0 %v657
        %v659 = vpop.xlane.xlu0 %658
        %v660 = vmax.f32 %v603, %v605
        %661 = vmax.xlane.f32.xlu0 %v660
        %v662 = vpop.xlane.xlu0 %661
        %v663 = vmax.f32 %v609, %v611
        %664 = vmax.xlane.f32.xlu0 %v663
        %v665 = vpop.xlane.xlu0 %664
        %v666 = vmax.f32 %v613, %v615
        %667 = vmax.xlane.f32.xlu0 %v666
        %v668 = vpop.xlane.xlu0 %667
        %v669 = vmax.f32 %v619, %v621
        %670 = vmax.xlane.f32.xlu0 %v669
        %v671 = vpop.xlane.xlu0 %670
        %v672 = vmax.f32 %v623, %v625
        %673 = vmax.xlane.f32.xlu0 %v672
        %v674 = vpop.xlane.xlu0 %673
        %v675 = vsub.f32 %v549, %v629
        %v676 = vsub.f32 %v551, %v629
        %v677 = vsub.f32 %v553, %v632
        %v678 = vsub.f32 %v555, %v632
        %v679 = vsub.f32 %v559, %v635
        %v680 = vsub.f32 %v561, %v635
        %v681 = vsub.f32 %v563, %v638
        %v682 = vsub.f32 %v565, %v638
        %v683 = vsub.f32 %v569, %v641
        %v684 = vsub.f32 %v571, %v641
        %v685 = vsub.f32 %v573, %v644
        %v686 = vsub.f32 %v575, %v644
        %v687 = vsub.f32 %v579, %v647
        %v688 = vsub.f32 %v581, %v647
        %v689 = vsub.f32 %v583, %v650
        %v690 = vsub.f32 %v585, %v650
        %v691 = vsub.f32 %v589, %v653
        %v692 = vsub.f32 %v591, %v653
        %v693 = vsub.f32 %v593, %v656
        %v694 = vsub.f32 %v595, %v656
        %v695 = vsub.f32 %v599, %v659
        %v696 = vsub.f32 %v601, %v659
        %v697 = vsub.f32 %v603, %v662
        %v698 = vsub.f32 %v605, %v662
        %v699 = vsub.f32 %v609, %v665
        %v700 = vsub.f32 %v611, %v665
        %v701 = vsub.f32 %v613, %v668
        %v702 = vsub.f32 %v615, %v668
        %v703 = vsub.f32 %v619, %v671
        %v704 = vsub.f32 %v621, %v671
        %v705 = vsub.f32 %v623, %v674
        %v706 = vsub.f32 %v625, %v674
        %v707 = vmul.f32 %v675, 1.442695
        %v708 = vpow.pop %v707
        %v709 = vmul.f32 %v676, 1.442695
        %v710 = vpow.pop %v709
        %v711 = vmul.f32 %v677, 1.442695
        %v712 = vpow.pop %v711
        %v713 = vmul.f32 %v678, 1.442695
        %v714 = vpow.pop %v713
        %v715 = vmul.f32 %v679, 1.442695
        %v716 = vpow.pop %v715
        %v717 = vmul.f32 %v680, 1.442695
        %v718 = vpow.pop %v717
        %v719 = vmul.f32 %v681, 1.442695
        %v720 = vpow.pop %v719
        %v721 = vmul.f32 %v682, 1.442695
        %v722 = vpow.pop %v721
        %v723 = vmul.f32 %v683, 1.442695
        %v724 = vpow.pop %v723
        %v725 = vmul.f32 %v684, 1.442695
        %v726 = vpow.pop %v725
        %v727 = vmul.f32 %v685, 1.442695
        %v728 = vpow.pop %v727
        %v729 = vmul.f32 %v686, 1.442695
        %v730 = vpow.pop %v729
        %v731 = vmul.f32 %v687, 1.442695
        %v732 = vpow.pop %v731
        %v733 = vmul.f32 %v688, 1.442695
        %v734 = vpow.pop %v733
        %v735 = vmul.f32 %v689, 1.442695
        %v736 = vpow.pop %v735
        %v737 = vmul.f32 %v690, 1.442695
        %v738 = vpow.pop %v737
        %v739 = vmul.f32 %v691, 1.442695
        %v740 = vpow.pop %v739
        %v741 = vmul.f32 %v692, 1.442695
        %v742 = vpow.pop %v741
        %v743 = vmul.f32 %v693, 1.442695
        %v744 = vpow.pop %v743
        %v745 = vmul.f32 %v694, 1.442695
        %v746 = vpow.pop %v745
        %v747 = vmul.f32 %v695, 1.442695
        %v748 = vpow.pop %v747
        %v749 = vmul.f32 %v696, 1.442695
        %v750 = vpow.pop %v749
        %v751 = vmul.f32 %v697, 1.442695
        %v752 = vpow.pop %v751
        %v753 = vmul.f32 %v698, 1.442695
        %v754 = vpow.pop %v753
        %v755 = vmul.f32 %v699, 1.442695
        %v756 = vpow.pop %v755
        %v757 = vmul.f32 %v700, 1.442695
        %v758 = vpow.pop %v757
        %v759 = vmul.f32 %v701, 1.442695
        %v760 = vpow.pop %v759
        %v761 = vmul.f32 %v702, 1.442695
        %v762 = vpow.pop %v761
        %v763 = vmul.f32 %v703, 1.442695
        %v764 = vpow.pop %v763
        %v765 = vmul.f32 %v704, 1.442695
        %v766 = vpow.pop %v765
        %v767 = vmul.f32 %v705, 1.442695
        %v768 = vpow.pop %v767
        %v769 = vmul.f32 %v706, 1.442695
        %v770 = vpow.pop %v769
        %v771 = vadd.f32 %v708, %v710
        %772 = vadd.xlane.f32.xlu0 %v771
        %v773 = vpop.xlane.xlu0 %772
        %v774 = vadd.f32 %v712, %v714
        %775 = vadd.xlane.f32.xlu0 %v774
        %v776 = vpop.xlane.xlu0 %775
        %v777 = vadd.f32 %v716, %v718
        %778 = vadd.xlane.f32.xlu0 %v777
        %v779 = vpop.xlane.xlu0 %778
        %v780 = vadd.f32 %v720, %v722
        %781 = vadd.xlane.f32.xlu0 %v780
        %v782 = vpop.xlane.xlu0 %781
        %v783 = vadd.f32 %v724, %v726
        %784 = vadd.xlane.f32.xlu0 %v783
        %v785 = vpop.xlane.xlu0 %784
        %v786 = vadd.f32 %v728, %v730
        %787 = vadd.xlane.f32.xlu0 %v786
        %v788 = vpop.xlane.xlu0 %787
        %v789 = vadd.f32 %v732, %v734
        %790 = vadd.xlane.f32.xlu0 %v789
        %v791 = vpop.xlane.xlu0 %790
        %v792 = vadd.f32 %v736, %v738
        %793 = vadd.xlane.f32.xlu0 %v792
        %v794 = vpop.xlane.xlu0 %793
        %v795 = vadd.f32 %v740, %v742
        %796 = vadd.xlane.f32.xlu0 %v795
        %v797 = vpop.xlane.xlu0 %796
        %v798 = vadd.f32 %v744, %v746
        %799 = vadd.xlane.f32.xlu0 %v798
        %v800 = vpop.xlane.xlu0 %799
        %v801 = vadd.f32 %v748, %v750
        %802 = vadd.xlane.f32.xlu0 %v801
        %v803 = vpop.xlane.xlu0 %802
        %v804 = vadd.f32 %v752, %v754
        %805 = vadd.xlane.f32.xlu0 %v804
        %v806 = vpop.xlane.xlu0 %805
        %v807 = vadd.f32 %v756, %v758
        %808 = vadd.xlane.f32.xlu0 %v807
        %v809 = vpop.xlane.xlu0 %808
        %v810 = vadd.f32 %v760, %v762
        %811 = vadd.xlane.f32.xlu0 %v810
        %v812 = vpop.xlane.xlu0 %811
        %v813 = vadd.f32 %v764, %v766
        %814 = vadd.xlane.f32.xlu0 %v813
        %v815 = vpop.xlane.xlu0 %814
        %v816 = vadd.f32 %v768, %v770
        %817 = vadd.xlane.f32.xlu0 %v816
        %v818 = vpop.xlane.xlu0 %817
        %v819 = vrcp.pop %v773
        %v820 = vrcp.pop %v776
        %v821 = vrcp.pop %v779
        %v822 = vrcp.pop %v782
        %v823 = vrcp.pop %v785
        %v824 = vrcp.pop %v788
        %v825 = vrcp.pop %v791
        %v826 = vrcp.pop %v794
        %v827 = vrcp.pop %v797
        %v828 = vrcp.pop %v800
        %v829 = vrcp.pop %v803
        %v830 = vrcp.pop %v806
        %v831 = vrcp.pop %v809
        %v832 = vrcp.pop %v812
        %v833 = vrcp.pop %v815
        %v834 = vrcp.pop %v818
        %v835 = vmul.f32 %v708, %v819
        %v836 = vmul.f32 %v710, %v819
        %v837 = vmul.f32 %v712, %v820
        %v838 = vmul.f32 %v714, %v820
        %v839 = vmul.f32 %v716, %v821
        %v840 = vmul.f32 %v718, %v821
        %v841 = vmul.f32 %v720, %v822
        %v842 = vmul.f32 %v722, %v822
        %v843 = vmul.f32 %v724, %v823
        %v844 = vmul.f32 %v726, %v823
        %v845 = vmul.f32 %v728, %v824
        %v846 = vmul.f32 %v730, %v824
        %v847 = vmul.f32 %v732, %v825
        %v848 = vmul.f32 %v734, %v825
        %v849 = vmul.f32 %v736, %v826
        %v850 = vmul.f32 %v738, %v826
        %v851 = vmul.f32 %v740, %v827
        %v852 = vmul.f32 %v742, %v827
        %v853 = vmul.f32 %v744, %v828
        %v854 = vmul.f32 %v746, %v828
        %v855 = vmul.f32 %v748, %v829
        %v856 = vmul.f32 %v750, %v829
        %v857 = vmul.f32 %v752, %v830
        %v858 = vmul.f32 %v754, %v830
        %v859 = vmul.f32 %v756, %v831
        %v860 = vmul.f32 %v758, %v831
        %v861 = vmul.f32 %v760, %v832
        %v862 = vmul.f32 %v762, %v832
        %v863 = vmul.f32 %v764, %v833
        %v864 = vmul.f32 %v766, %v833
        %v865 = vmul.f32 %v768, %v834
        %v866 = vmul.f32 %v770, %v834
        %v867 = vpack.c.bf16 %v837, %v835
        %v868 = vpack.c.bf16 %v838, %v836
        %v869 = vpack.c.bf16 %v841, %v839
        %v870 = vpack.c.bf16 %v842, %v840
        %v871 = vpack.c.bf16 %v845, %v843
        %v872 = vpack.c.bf16 %v846, %v844
        %v873 = vpack.c.bf16 %v849, %v847
        %v874 = vpack.c.bf16 %v850, %v848
        %v875 = vpack.c.bf16 %v853, %v851
        %v876 = vpack.c.bf16 %v854, %v852
        %v877 = vpack.c.bf16 %v857, %v855
        %v878 = vpack.c.bf16 %v858, %v856
        %v879 = vpack.c.bf16 %v861, %v859
        %v880 = vpack.c.bf16 %v862, %v860
        %v881 = vpack.c.bf16 %v865, %v863
        %v882 = vpack.c.bf16 %v866, %v864
        %v899 = vunpack.c.l.b16 %v867
        %v900 = vunpack.c.l.b16 %v868
        %v901 = vunpack.c.h.b16 %v867
        %v902 = vunpack.c.h.b16 %v868
        %v903 = vunpack.c.l.b16 %v869
        %v904 = vunpack.c.l.b16 %v870
        %v905 = vunpack.c.h.b16 %v869
        %v906 = vunpack.c.h.b16 %v870
        %v907 = vunpack.c.l.b16 %v871
        %v908 = vunpack.c.l.b16 %v872
        %v909 = vunpack.c.h.b16 %v871
        %v910 = vunpack.c.h.b16 %v872
        %v911 = vunpack.c.l.b16 %v873
        %v912 = vunpack.c.l.b16 %v874
        %v913 = vunpack.c.h.b16 %v873
        %v914 = vunpack.c.h.b16 %v874
        %v915 = vunpack.c.l.b16 %v875
        %v916 = vunpack.c.l.b16 %v876
        %v917 = vunpack.c.h.b16 %v875
        %v918 = vunpack.c.h.b16 %v876
        %v919 = vunpack.c.l.b16 %v877
        %v920 = vunpack.c.l.b16 %v878
        %v921 = vunpack.c.h.b16 %v877
        %v922 = vunpack.c.h.b16 %v878
        %v923 = vunpack.c.l.b16 %v879
        %v924 = vunpack.c.l.b16 %v880
        %v925 = vunpack.c.h.b16 %v879
        %v926 = vunpack.c.h.b16 %v880
        %v927 = vunpack.c.l.b16 %v881
        %v928 = vunpack.c.l.b16 %v882
        %v929 = vunpack.c.h.b16 %v881
        %v930 = vunpack.c.h.b16 %v882
        %v931 = vpack.c.b16 %v900, %v899
        %v932 = vpack.c.b16 %v902, %v901
        %v933 = vpack.c.b16 %v904, %v903
        %v934 = vpack.c.b16 %v906, %v905
        %v935 = vpack.c.b16 %v908, %v907
        %v936 = vpack.c.b16 %v910, %v909
        %v937 = vpack.c.b16 %v912, %v911
        %v938 = vpack.c.b16 %v914, %v913
        %v939 = vpack.c.b16 %v916, %v915
        %v940 = vpack.c.b16 %v918, %v917
        %v941 = vpack.c.b16 %v920, %v919
        %v942 = vpack.c.b16 %v922, %v921
        %v943 = vpack.c.b16 %v924, %v923
        %v944 = vpack.c.b16 %v926, %v925
        %v945 = vpack.c.b16 %v928, %v927
        %v946 = vpack.c.b16 %v930, %v929
        %963 = vst [vmem:[%s381] sm:$0xff] %v931
        %964 = vst [vmem:[%s381 + $0x8] sm:$0xff] %v932
        %965 = vst [vmem:[%s381 + $0x10] sm:$0xff] %v933
        %966 = vst [vmem:[%s381 + $0x18] sm:$0xff] %v934
        %967 = vst [vmem:[%s381 + $0x20] sm:$0xff] %v935
        %968 = vst [vmem:[%s381 + $0x28] sm:$0xff] %v936
        %969 = vst [vmem:[%s381 + $0x30] sm:$0xff] %v937
        %970 = vst [vmem:[%s381 + $0x38] sm:$0xff] %v938
        %971 = vst [vmem:[%s381 + $0x40] sm:$0xff] %v939
        %972 = vst [vmem:[%s381 + $0x48] sm:$0xff] %v940
        %973 = vst [vmem:[%s381 + $0x50] sm:$0xff] %v941
        %974 = vst [vmem:[%s381 + $0x58] sm:$0xff] %v942
        %975 = vst [vmem:[%s381 + $0x60] sm:$0xff] %v943
        %976 = vst [vmem:[%s381 + $0x68] sm:$0xff] %v944
        %977 = vst [vmem:[%s381 + $0x70] sm:$0xff] %v945
        %978 = vst [vmem:[%s381 + $0x78] sm:$0xff] %v946
        %v983 = vunpack.c.l.b16 %v452
        %v984 = vunpack.c.h.b16 %v452
        %v985 = vunpack.c.l.b16 %v453
        %v986 = vunpack.c.h.b16 %v453
        %v987 = vunpack.c.l.b16 %v454
        %v988 = vunpack.c.h.b16 %v454
        %v989 = vunpack.c.l.b16 %v455
        %v990 = vunpack.c.h.b16 %v455
        %v991 = vpack.c.b16 %v985, %v983
        %v992 = vpack.c.b16 %v986, %v984
        %v993 = vpack.c.b16 %v989, %v987
        %v994 = vpack.c.b16 %v990, %v988
        %999 = vmatprep.subr.bf16.mxu0 %v882
        %1000 = vmatpush1.bf16.xpose.msra.mxu0 %v881
        %1001 = vmatprep.subr.bf16.mxu0 %v880
        %1002 = vmatpush1.bf16.xpose.msra.mxu0 %v879
        %1003 = vmatprep.subr.bf16.mxu0 %v878
        %1004 = vmatpush1.bf16.xpose.msra.mxu0 %v877
        %1005 = vmatprep.subr.bf16.mxu0 %v876
        %1006 = vmatpush1.bf16.xpose.msra.mxu0 %v875
        %1007 = vmatprep.subr.bf16.mxu0 %v874
        %1008 = vmatpush1.bf16.xpose.msra.mxu0 %v873
        %1009 = vmatprep.subr.bf16.mxu0 %v872
        %1010 = vmatpush1.bf16.xpose.msra.mxu0 %v871
        %1011 = vmatprep.subr.bf16.mxu0 %v870
        %1012 = vmatpush1.bf16.xpose.msra.mxu0 %v869
        %1013 = vmatprep.subr.bf16.mxu0 %v868
        %1014 = vmatpush1.bf16.xpose.msra.mxu0 %v867
        %1015 = vmatprep.subr.bf16.mxu0 0
        %1016 = vmatpush2.bf16.xpose.msra.mxu0 0
        %1017 = vmatprep.subr.bf16.mxu0 0
        %1018 = vmatpush2.bf16.xpose.msra.mxu0 0
        %1019 = vmatprep.subr.bf16.mxu0 0
        %1020 = vmatpush2.bf16.xpose.msra.mxu0 0
        %1021 = vmatprep.subr.bf16.mxu0 0
        %1022 = vmatpush2.bf16.xpose.msra.mxu0 0
        %1023 = vmatprep.subr.bf16.mxu0 0
        %1024 = vmatpush2.bf16.xpose.msra.mxu0 0
        %1025 = vmatprep.subr.bf16.mxu0 0
        %1026 = vmatpush2.bf16.xpose.msra.mxu0 0
        %1027 = vmatprep.subr.bf16.mxu0 0
        %1028 = vmatpush2.bf16.xpose.msra.mxu0 0
        %1029 = vmatprep.subr.bf16.mxu0 0
        %1030 = vmatpush2.bf16.xpose.msra.mxu0 0
        %1031 = vmatprep.mubr.bf16.mxu0 %v992
        %1032 = vmatmul.mubr.bf16.gmra.mxu0 %v991
        %v1033 = vpop.f32.mrf.mxu0
        %v1034 = vadd.f32 0.0, %v1033
        %v1035 = vpop.f32.mrf.mxu0
        %v1036 = vpop.f32.mrf.mxu0
        %v1037 = vadd.f32 0.0, %v1036
        %v1038 = vpop.f32.mrf.mxu0
        %1039 = vmatprep.mubr.bf16.mxu0 %v994
        %1040 = vmatmul.mubr.bf16.gmra.mxu0 %v993
        %v1041 = vpop.f32.mrf.mxu0
        %v1042 = vadd.f32 0.0, %v1041
        %v1043 = vpop.f32.mrf.mxu0
        %v1044 = vpop.f32.mrf.mxu0
        %v1045 = vadd.f32 0.0, %v1044
        %v1046 = vpop.f32.mrf.mxu0
        %1047 = vdwg.mxu0
        %s1048 = sld [smem:[#allocation2]]
        %v1049 = vstv %s1048
        %v1050 = vmul.f32 %v1049, %v1034
        %v1051 = vmul.f32 %v1049, %v1037
        %v1052 = vmul.f32 %v1049, %v1042
        %v1053 = vmul.f32 %v1049, %v1045
        %v1054 = vadd.f32 %v1050, %v394
        %v1055 = vadd.f32 %v1051, %v395
        %v1056 = vadd.f32 %v1052, %v396
        %v1057 = vadd.f32 %v1053, %v397
        %1058 = vst [vmem:[%s374] sm:$0xff] %v1054
        %1059 = vst [vmem:[%s374 + $0x8] sm:$0xff] %v1055
        %1060 = vst [vmem:[%s374 + $0x10] sm:$0xff] %v1056
        %1061 = vst [vmem:[%s374 + $0x18] sm:$0xff] %v1057
        %s1062 = sand.u32 %s188, 1
        %s1063 = sand.u32 %s188, 1
        %s1064 = smul.addr %s1063, 32
        %s1065 = scalar_lea.vmem [#allocation4], %s1064
        %s1066 = sand.u32 %s216, 1
        %s1067 = scalar_lea.sflag [#allocation6], %s1066
        %s1068 = sand.u32 %s216, 1
        %s1069 = smul.addr %s1068, 128
        %s1070 = scalar_lea.vmem [#allocation5], %s1069
        // Predicated region
        $region83: #{self_attn_pallas.3} parent=77 // pred_check
          %p1071 = pneg %p198
        $region84: #{self_attn_pallas.3} parent=77 // pred_check_branch
          %1073 = sbr.rel (%p1071) target = $region86
        $region85: #{self_attn_pallas.3} parent=77 // pred_region
          %s1074 = smul.addr %s27, 8
          %s1075 = sadd.s32 %s28, %s1074
          %s1076 = smul.addr %s1075, 8
          %s1077 = scalar_lea.vmem %s6, %s1076
          // Predicated region
          $region87: #{self_attn_pallas.3} parent=85 // pred_check
            _
          $region88: #{self_attn_pallas.3} parent=85 // pred_check_branch
            %1079 = sbr.rel (0) target = $region90
          $region89: #{self_attn_pallas.3} parent=85 // pred_region
            // Predicated region
            $region91: #{self_attn_pallas.3} parent=89 // pred_check
              _
            $region92: #{self_attn_pallas.3} parent=89 // pred_check_branch
              %1081 = sbr.rel (0) target = $region94
            $region93: #{self_attn_pallas.3} parent=89 // pred_region
              // Predicated region
              $region106: #{self_attn_pallas.3} parent=93 // pred_check
                _
              $region107: #{self_attn_pallas.3} parent=93 // pred_check_branch
                %1103 = sbr.rel (0) target = $region109
              $region108: #{self_attn_pallas.3} parent=93 // pred_region
                loop: start=0, step=1, limit=1
                $region110: #{self_attn_pallas.3} parent=108 // loop_pre_header
                  _
                $region111: #{self_attn_pallas.3} parent=108 // loop_header
                  %s1105 = sphi 0, %s1109
                  %p1106 = scmp.ge.s32.totalorder %s1105, 1
                  %s1110 = sphi %s1065, %s1065
                  %s1111 = sphi %s1077, %s1077
                $region112: #{self_attn_pallas.3} parent=108 // loop_header_branch
                  %1108 = sbr.rel (%p1106) target = $region116
                $region113: #{self_attn_pallas.3} parent=108 // loop_body
                  %v1112 = vld [vmem:[%s1110] sm:$0xff]
                  %1113 = vst [vmem:[%s1111] sm:$0xff] %v1112
                  %v1114 = vld [vmem:[%s1110 + $0x8] sm:$0xff]
                  %1115 = vst [vmem:[%s1111 + $0x10] sm:$0xff] %v1114
                  %v1116 = vld [vmem:[%s1110 + $0x10] sm:$0xff]
                  %1117 = vst [vmem:[%s1111 + $0x20] sm:$0xff] %v1116
                  %v1118 = vld [vmem:[%s1110 + $0x18] sm:$0xff]
                  %1119 = vst [vmem:[%s1111 + $0x30] sm:$0xff] %v1118
                $region114: #{self_attn_pallas.3} parent=108 // loop_footer
                  %s1109 = sadd.s32 1, %s1105
                $region115: #{self_attn_pallas.3} parent=108 // loop_footer_branch
                  %1104 = sbr.rel target = $region111
                $region116: #{self_attn_pallas.3} parent=108 // loop_exit
                  _
              $region109: #{self_attn_pallas.3} parent=93 // pred_fallthru
                _
              // Predicated region
              $region117: #{self_attn_pallas.3} parent=93 // pred_check
                _
              $region118: #{self_attn_pallas.3} parent=93 // pred_check_branch
                %1121 = sbr.rel target = $region120
              $region119: #{self_attn_pallas.3} parent=93 // pred_region
                _
              $region120: #{self_attn_pallas.3} parent=93 // pred_fallthru
                _
            $region94: #{self_attn_pallas.3} parent=89 // pred_fallthru
              _
            // Predicated region
            $region95: #{self_attn_pallas.3} parent=89 // pred_check
              _
            $region96: #{self_attn_pallas.3} parent=89 // pred_check_branch
              %1083 = sbr.rel target = $region98
            $region97: #{self_attn_pallas.3} parent=89 // pred_region
              %s1085 = ssub.s32 256, 1
              loop: start=0, step=1, limit=1
              $region99: #{self_attn_pallas.3} parent=97 // loop_pre_header
                _
              $region100: #{self_attn_pallas.3} parent=97 // loop_header
                %s1087 = sphi 0, %s1091
                %p1088 = scmp.ge.s32.totalorder %s1087, 1
                %s1092 = sphi %s1065, %s1065
                %s1093 = sphi %s1077, %s1077
              $region101: #{self_attn_pallas.3} parent=97 // loop_header_branch
                %1090 = sbr.rel (%p1088) target = $region105
              $region102: #{self_attn_pallas.3} parent=97 // loop_body
                %v1094 = vld [vmem:[%s1092] sm:%s1085]
                %1095 = vst [vmem:[%s1093] sm:%s1085] %v1094
                %v1096 = vld [vmem:[%s1092 + $0x8] sm:%s1085]
                %1097 = vst [vmem:[%s1093 + $0x10] sm:%s1085] %v1096
                %v1098 = vld [vmem:[%s1092 + $0x10] sm:%s1085]
                %1099 = vst [vmem:[%s1093 + $0x20] sm:%s1085] %v1098
                %v1100 = vld [vmem:[%s1092 + $0x18] sm:%s1085]
                %1101 = vst [vmem:[%s1093 + $0x30] sm:%s1085] %v1100
              $region103: #{self_attn_pallas.3} parent=97 // loop_footer
                %s1091 = sadd.s32 1, %s1087
              $region104: #{self_attn_pallas.3} parent=97 // loop_footer_branch
                %1086 = sbr.rel target = $region100
              $region105: #{self_attn_pallas.3} parent=97 // loop_exit
                _
            $region98: #{self_attn_pallas.3} parent=89 // pred_fallthru
              _
          $region90: #{self_attn_pallas.3} parent=85 // pred_fallthru
            _
          %1122 = vnop
        $region86: #{self_attn_pallas.3} parent=77 // pred_fallthru
          _
        // Predicated region
        $region121: #{self_attn_pallas.3} parent=77 // pred_check
          %p1123 = pneg %p226
        $region122: #{self_attn_pallas.3} parent=77 // pred_check_branch
          %1125 = sbr.rel (%p1123) target = $region124
        $region123: #{self_attn_pallas.3} parent=77 // pred_region
          %s1126 = smul.u32 16, %s28
          %s1128 = ssub.s32 2048, 2048
          %1129 = vsyncadd %s1067, %s1128
          %s1130 = smul.addr %s1126, 2
          %s1131 = smul.addr %s27, 64
          %s1132 = sadd.s32 %s1130, %s1131
          %s1133 = smul.addr %s1132, 64
          %s1134 = scalar_lea.hbm %s7, %s1133
          %s1135 = sshll.u32 %s1070, 4
          %s1136 = int_to_ptr.vmem [resolvable:$true] %s1135
          %1141 = dma.vmem_to_hbm [thread:$0]  %s1136, 2048, %s1134, %s1067, 128, 128, 8
        $region124: #{self_attn_pallas.3} parent=77 // pred_fallthru
          _
      $region78: #{self_attn_pallas.3} parent=5 // pred_fallthru
        _
      %p1142 = scmp.le.s32.totalorder 2, %s18
      // Predicated region
      $region125: #{self_attn_pallas.3} parent=5 // pred_check
        %p1143 = pneg %p1142
      $region126: #{self_attn_pallas.3} parent=5 // pred_check_branch
        %1145 = sbr.rel (%p1143) target = $region128
      $region127: #{self_attn_pallas.3} parent=5 // pred_region
        %s1146 = ssub.s32 %s18, 2
        // Predicated region
        $region129: #{self_attn_pallas.3} parent=127 // pred_check
          %p1147 = pneg %p204
        $region130: #{self_attn_pallas.3} parent=127 // pred_check_branch
          %1149 = sbr.rel (%p1147) target = $region132
        $region131: #{self_attn_pallas.3} parent=127 // pred_region
          %s1150 = sand.u32 %s189, 1
          %s1151 = sand.u32 %s189, 1
          %s1152 = smul.addr %s1151, 32
          %s1153 = scalar_lea.vmem [#allocation4], %s1152
        $region132: #{self_attn_pallas.3} parent=127 // pred_fallthru
          _
        // Predicated region
        $region133: #{self_attn_pallas.3} parent=127 // pred_check
          %p1154 = pneg %p232
        $region134: #{self_attn_pallas.3} parent=127 // pred_check_branch
          %1156 = sbr.rel (%p1154) target = $region136
        $region135: #{self_attn_pallas.3} parent=127 // pred_region
          %s1157 = sand.u32 %s217, 1
          %s1158 = scalar_lea.sflag [#allocation6], %s1157
          %s1159 = sand.u32 %s217, 1
          %s1160 = smul.addr %s1159, 128
          %s1161 = scalar_lea.vmem [#allocation5], %s1160
          %1162 = dma.done %s1158, 2048
        $region136: #{self_attn_pallas.3} parent=127 // pred_fallthru
          _
      $region128: #{self_attn_pallas.3} parent=5 // pred_fallthru
        _
    $region6: #{self_attn_pallas.3} parent=1 // loop_footer
      %s22 = sadd.s32 1, %s18
    $region7: #{self_attn_pallas.3} parent=1 // loop_footer_branch
      %17 = sbr.rel target = $region3
    $region8: #{self_attn_pallas.3} parent=1 // loop_exit
      _
    %1163 = vsyncpa [#allocation6], 1
    %s1164 = scalar_lea.sflag [#allocation6], 1
    %1165 = vsyncpa %s1164, 1

</llo_original>
